<compile_context>
chip_gen: v5e
topology: v5e:2x2
jax: 0.10.0
libtpu: 0.0.40
codegen_flags: <defaults>
</compile_context>

<pallas_src>
import numpy as np
import jax
import jax.numpy as jnp
from jax.experimental import pallas as pl
from jax.experimental.pallas import tpu as pltpu

NUM_HEADS = 2


# ----------------------------------------------------------------------------
# Pallas kernel: one V2XT encoder layer (masked CAV attention over agents +
# feed-forward, pre-norm residual), final LayerNorm, ego agent only.
# Block layout: x (1, L, C, TP) [pixels in lanes], out (1, C, TP).
# ----------------------------------------------------------------------------
def v2xt_encoder_kernel(x_ref,        # (1, L, C, TP)   bf16
                        wqkv_ref,     # (C+2LC, LC)     bf16  [Qego*scale; K blk-diag; V blk-diag]
                        wmisc_ref,    # (2C+M, max(C,M)) bf16 [Wo; W1; W2]
                        aux_ref,      # (7C+M+Lnh+L, LC) f32  [LN vecs/biases col0; sel_qk; stat_sel]
                        bias_ref,     # (1, L*nh, 1)    f32   additive mask bias (0 / -1e9)
                        o_ref,        # (1, C, TP)
                        qkv_ref):     # VMEM scratch (C+2LC, TP) f32
    _, L, C, TP = x_ref.shape
    nh = NUM_HEADS
    dh = C // nh
    LC = L * C
    M = wmisc_ref.shape[0] - 2 * C
    eps = 1e-5
    f32 = jnp.float32

    # ---- unpack fused f32 aux buffer (all static, sublane-aligned slices) ---
    ln1g = aux_ref[0 * C:1 * C, 0:1]
    ln1b = aux_ref[1 * C:2 * C, 0:1]
    ln2g = aux_ref[2 * C:3 * C, 0:1]
    ln2b = aux_ref[3 * C:4 * C, 0:1]
    lnfg = aux_ref[4 * C:5 * C, 0:1]
    lnfb = aux_ref[5 * C:6 * C, 0:1]
    b1 = aux_ref[6 * C:6 * C + M, 0:1]
    b2 = aux_ref[6 * C + M:7 * C + M, 0:1]
    sel_off = 7 * C + M
    sel_qk = aux_ref[sel_off:sel_off + L * nh, :]              # (L*nh, LC)
    stat_sel = aux_ref[sel_off + L * nh:sel_off + L * nh + L, :]  # (L, LC), entries 1/C

    # ---- LayerNorm-1 for all agents; stats via MXU (XLU offload) ------------
    x_all = jnp.concatenate(
        [x_ref[0, l].astype(f32) for l in range(L)], axis=0)          # (LC, TP)
    mu = jnp.dot(stat_sel, x_all, preferred_element_type=f32)         # (L, TP) means
    msq = jnp.dot(stat_sel, x_all * x_all, preferred_element_type=f32)
    inv = jax.lax.rsqrt(msq - mu * mu + eps)                          # (L, TP)

    xn_parts = []
    for l in range(L):
        xs = x_all[l * C:(l + 1) * C]                                  # (C, TP)
        xn_parts.append((xs - mu[l:l + 1]) * inv[l:l + 1] * ln1g + ln1b)
    xn_all = jnp.concatenate(xn_parts, axis=0).astype(jnp.bfloat16)    # (LC, TP)

    # ---- fused ego-Q + block-diagonal K/V projection, staged in VMEM --------
    qkv_ref[...] = jnp.dot(wqkv_ref[...], xn_all, preferred_element_type=f32)

    # ---- packed attention scores via selector matmul (MXU) ------------------
    q0 = qkv_ref[0:C, :]                                               # (C, TP), scale pre-folded
    prod = jnp.concatenate(
        [q0 * qkv_ref[C + l * C:C + (l + 1) * C, :] for l in range(L)],
        axis=0)                                                        # (LC, TP)
    scores = jnp.dot(sel_qk, prod, preferred_element_type=f32) + bias_ref[0]  # (L*nh, TP)

    # ---- per-head softmax over agents (rows are h-major: r = h*L + l) -------
    s0 = scores[0:L]
    s1 = scores[L:2 * L]
    e0 = jnp.exp(s0 - jnp.max(s0, axis=0, keepdims=True))
    e1 = jnp.exp(s1 - jnp.max(s1, axis=0, keepdims=True))
    inv0 = pl.reciprocal(jnp.sum(e0, axis=0, keepdims=True), approx=True)  # EUP
    inv1 = pl.reciprocal(jnp.sum(e1, axis=0, keepdims=True), approx=True)

    # ---- value accumulation (VPU sublane-broadcast MAC, ego output only) ----
    vb = C + LC
    acc0 = e0[0:1] * qkv_ref[vb:vb + dh, :]
    acc1 = e1[0:1] * qkv_ref[vb + dh:vb + C, :]
    for l in range(1, L):
        acc0 = acc0 + e0[l:l + 1] * qkv_ref[vb + l * C:vb + l * C + dh, :]
        acc1 = acc1 + e1[l:l + 1] * qkv_ref[vb + l * C + dh:vb + (l + 1) * C, :]
    att = jnp.concatenate([acc0 * inv0, acc1 * inv1], axis=0).astype(jnp.bfloat16)

    wo = wmisc_ref[0:C, 0:C]                                           # (C, C) bf16
    x0 = x_ref[0, 0].astype(f32) + jnp.dot(wo, att, preferred_element_type=f32)

    # ---- feed-forward (ego only) --------------------------------------------
    mu2 = jnp.mean(x0, axis=0, keepdims=True)
    inv2 = jax.lax.rsqrt(jnp.mean(x0 * x0, axis=0, keepdims=True) - mu2 * mu2 + eps)
    xn2 = ((x0 - mu2) * inv2 * ln2g + ln2b).astype(jnp.bfloat16)
    h1 = jnp.dot(wmisc_ref[C:C + M, 0:C], xn2, preferred_element_type=f32) + b1
    # TODO(synk): PyTorch nn.GELU default is exact erf; tanh approx keeps an
    # EUP lowering (negligible numeric difference).
    h1 = jax.nn.gelu(h1, approximate=True).astype(jnp.bfloat16)
    x0 = x0 + jnp.dot(wmisc_ref[C + M:2 * C + M, 0:M], h1,
                      preferred_element_type=f32) + b2

    # ---- final LayerNorm, lane-dense channel-major store --------------------
    muf = jnp.mean(x0, axis=0, keepdims=True)
    invf = jax.lax.rsqrt(jnp.mean(x0 * x0, axis=0, keepdims=True) - muf * muf + eps)
    o_ref[0] = ((x0 - muf) * invf * lnfg + lnfb).astype(o_ref.dtype)


# ----------------------------------------------------------------------------
# Plain-JAX glue
# ----------------------------------------------------------------------------
def regroup(features, record_len, max_cav):
    """features: (sum(record_len), C, H, W) -> (B, max_cav, C, H, W), mask (B, max_cav)."""
    cuts = np.cumsum(np.asarray(record_len))[:-1]
    splits = jnp.split(features, cuts, axis=0)
    padded, masks = [], []
    for f, n in zip(splits, record_len):
        assert n >= 1, "ego agent must always be present"
        pad = jnp.zeros((max_cav - int(n),) + f.shape[1:], f.dtype)
        padded.append(jnp.concatenate([f, pad], axis=0))
        masks.append(jnp.array([1.0] * int(n) + [0.0] * (max_cav - int(n)),
                               jnp.float32))
    return jnp.stack(padded, axis=0), jnp.stack(masks, axis=0)


def init_encoder_params(C, mlp_dim, key):
    ks = jax.random.split(key, 5)
    s = 0.05
    f32 = jnp.float32
    ln1g = jnp.ones((C, 1), f32)
    ln1b = jnp.zeros((C, 1), f32)
    wq = (jax.random.normal(ks[0], (C, C)) * s).astype(f32)          # (out, in)
    wkv = (jax.random.normal(ks[1], (2 * C, C)) * s).astype(f32)     # [K; V]
    wo = (jax.random.normal(ks[2], (C, C)) * s).astype(f32)
    ln2g = jnp.ones((C, 1), f32)
    ln2b = jnp.zeros((C, 1), f32)
    w1 = (jax.random.normal(ks[3], (mlp_dim, C)) * s).astype(f32)
    b1 = jnp.zeros((mlp_dim, 1), f32)
    w2 = (jax.random.normal(ks[4], (C, mlp_dim)) * s).astype(f32)
    b2 = jnp.zeros((C, 1), f32)
    lnfg = jnp.ones((C, 1), f32)
    lnfb = jnp.zeros((C, 1), f32)
    return [ln1g, ln1b, wq, wkv, wo, ln2g, ln2b, w1, b1, w2, b2, lnfg, lnfb]


def pack_params(params, L, nh):
    """Host-side packing of the 13 module parameters into 3 kernel buffers."""
    (ln1g, ln1b, wq, wkv, wo, ln2g, ln2b, w1, b1, w2, b2, lnfg, lnfb) = params
    C = int(wq.shape[0])
    dh = C // nh
    M = int(w1.shape[0])
    LC = L * C
    scale = dh ** -0.5
    wk = np.asarray(wkv[:C])
    wv = np.asarray(wkv[C:])

    # 1) fused block-diagonal projection weight: [Q_ego (scaled); K blocks; V blocks]
    Wbig = np.zeros((C + 2 * LC, LC), np.float32)
    Wbig[0:C, 0:C] = np.asarray(wq) * scale
    for l in range(L):
        Wbig[C + l * C:C + (l + 1) * C, l * C:(l + 1) * C] = wk
        Wbig[C + LC + l * C:C + LC + (l + 1) * C, l * C:(l + 1) * C] = wv
    wqkv_bd = jnp.asarray(Wbig, dtype=jnp.bfloat16)

    # 2) misc MXU weights packed into one bf16 buffer: [Wo; W1; W2]
    Wm = np.zeros((2 * C + M, max(C, M)), np.float32)
    Wm[0:C, 0:C] = np.asarray(wo)
    Wm[C:C + M, 0:C] = np.asarray(w1)
    Wm[C + M:2 * C + M, 0:M] = np.asarray(w2)
    wmisc = jnp.asarray(Wm, dtype=jnp.bfloat16)

    # 3) f32 aux buffer: LN vectors / FFN biases in column 0, then the score
    #    selector (L*nh, LC) and the LN1-stats selector (L, LC).
    rows = 7 * C + M + L * nh + L
    A = np.zeros((rows, LC), np.float32)
    off = 0
    for v, n in ((ln1g, C), (ln1b, C), (ln2g, C), (ln2b, C),
                 (lnfg, C), (lnfb, C), (b1, M), (b2, C)):
        A[off:off + n, 0] = np.asarray(v).reshape(-1)
        off += n
    sel_off = off                                  # = 7*C + M
    for h in range(nh):
        for l in range(L):
            A[sel_off + h * L + l, l * C + h * dh:l * C + (h + 1) * dh] = 1.0
    stat_off = sel_off + L * nh
    for l in range(L):
        A[stat_off + l, l * C:(l + 1) * C] = 1.0 / C
    aux = jnp.asarray(A, dtype=jnp.float32)
    return wqkv_bd, wmisc, aux


def _pick_pixel_tile(hw):
    # TP=512 default (sweep {256, 512, 1024}); fall back to the full extent
    # (allowed when the block equals the array dim, e.g. toy HW=64).
    for tp in (512, 256, 1024, 128):
        if hw % tp == 0:
            return tp
    return hw


def v2xt_fusion(x, mask, params, *, io_dtype=jnp.bfloat16, out_dtype=jnp.float32):
    """x: (B, L, C, HW) float32, mask: (B, L) -> fused ego feature (B, C, HW).

    out_dtype=jnp.bfloat16 halves HBM writeback on bandwidth-limited v5e if the
    downstream head tolerates it.
    """
    B, L, C, HW = x.shape
    nh = NUM_HEADS
    TP = _pick_pixel_tile(HW)
    num_tiles = HW // TP

    wqkv_bd, wmisc, aux = pack_params(params, L, nh)

    # Additive key-mask bias (0 for valid agents, -1e9 for padded ones),
    # expanded to one row per (head, agent) score row (h-major ordering).
    mask_bias = jnp.where(mask > 0.5, 0.0, -1e9).astype(jnp.float32)   # (B, L)
    bias = jnp.tile(mask_bias, (1, nh)).reshape(B, nh * L, 1)          # (B, L*nh, 1)

    xk = x.astype(io_dtype)                                            # bf16 over HBM

    in_specs = [
        pl.BlockSpec((1, L, C, TP), lambda b, t: (b, 0, 0, t)),
        pl.BlockSpec(wqkv_bd.shape, lambda b, t: (0, 0)),
        pl.BlockSpec(wmisc.shape, lambda b, t: (0, 0)),
        pl.BlockSpec(aux.shape, lambda b, t: (0, 0)),
        pl.BlockSpec((1, nh * L, 1), lambda b, t: (b, 0, 0)),
    ]
    out_spec = pl.BlockSpec((1, C, TP), lambda b, t: (b, 0, t))

    fused = pl.pallas_call(
        v2xt_encoder_kernel,
        out_shape=jax.ShapeDtypeStruct((B, C, HW), out_dtype),
        grid_spec=pltpu.PrefetchScalarGridSpec(
            num_scalar_prefetch=0,
            grid=(B, num_tiles),
            in_specs=in_specs,
            out_specs=out_spec,
            scratch_shapes=[pltpu.VMEM((C + 2 * L * C, TP), jnp.float32)]),
        compiler_params=pltpu.CompilerParams(
            dimension_semantics=("parallel", "parallel"),
            vmem_limit_bytes=32 * 1024 * 1024),
    )(xk, wqkv_bd, wmisc, aux, bias)

    return fused                                                       # (B, C, HW)


def hete_v2xvit_fuse_forward(middle_info, params, max_cav, neb_middle_info=None):
    feats = middle_info['features_2d']                 # (sum_n, C, H, W)  NCHW
    record_len = middle_info['record_len']

    regroup_feature, mask = regroup(feats, record_len, max_cav)   # (B,L,C,H,W)
    B, L, C, H, W = regroup_feature.shape

    # TODO(synk): neb_middle_info branch (ProjEncoder + bilinear interpolate)
    # and STTF warping with spatial_correction_matrix omitted.
    #
    # The PyTorch module broadcasts prior_encoding, concatenates it on the
    # channel axis and permutes to channel-last; the V2XT encoder strips those
    # 3 channels before attention, so the concat/permute/slice is dead data
    # movement and is skipped here (channel-major layout is kept end-to-end).
    x = regroup_feature.reshape(B, L, C, H * W)                   # no transpose

    fused = v2xt_fusion(x, mask, params)                          # (B, C, HW)
    fused = fused.reshape(B, C, H, W)                             # NCHW, no transpose
    return fused, 1


if __name__ == "__main__":
    key = jax.random.PRNGKey(0)
    k_feat, k_prior, k_par = jax.random.split(key, 3)

    B, L, C, H, W = 2, 4, 16, 8, 8          # max_cav=4, in_channels=16
    record_len = [3, 2]
    N = sum(record_len)

    feats = jax.random.normal(k_feat, (N, C, H, W), jnp.float32)
    prior = jax.random.normal(k_prior, (B, L, 3), jnp.float32)
    scm = jnp.tile(jnp.eye(4, dtype=jnp.float32)[None, None], (B, L, 1, 1))

    middle_info = {
        'features_2d': feats,
        'record_len': record_len,
        'prior_encoding': prior,
        'spatial_correction_matrix': scm,
        'model_name': 'PointPillar',
    }

    params = init_encoder_params(C, mlp_dim=32, key=k_par)

    fused, flag = hete_v2xvit_fuse_forward(middle_info, params, max_cav=L)
    fused = jax.block_until_ready(fused)

    assert fused.shape == (B, C, H, W), fused.shape
    assert flag == 1
    assert bool(jnp.all(jnp.isfinite(fused)))
    print("KERNEL_OK")
</pallas_src>

<mosaic_0001>
module attributes {stable_mosaic.version = 11 : i64} {
  func.func @v2xt_encoder_kernel(%arg0: i32, %arg1: i32, %arg2: memref<1x4x16x64xbf16, #tpu.memory_space<vmem>>, %arg3: memref<144x64xbf16, #tpu.memory_space<vmem>>, %arg4: memref<64x32xbf16, #tpu.memory_space<vmem>>, %arg5: memref<156x64xf32, #tpu.memory_space<vmem>>, %arg6: memref<1x8x1xf32, #tpu.memory_space<vmem>>, %arg7: memref<1x16x64xf32, #tpu.memory_space<vmem>>, %arg8: memref<144x64xf32, #tpu.memory_space<vmem>>) attributes {dimension_semantics = [#tpu.dimension_semantics<parallel>, #tpu.dimension_semantics<parallel>], iteration_bounds = array<i64: 2, 1>, scalar_prefetch = 0 : i64, scratch_operands = 1 : i64, tpu.core_type = #tpu.core_type<tc>, window_params = [{transform_indices = @transform_0, window_bounds = array<i64: 1, 4, 16, 64>}, {pipeline_mode = #tpu.pipeline_mode<synchronous>, transform_indices = @transform_1, window_bounds = array<i64: 144, 64>}, {pipeline_mode = #tpu.pipeline_mode<synchronous>, transform_indices = @transform_2, window_bounds = array<i64: 64, 32>}, {pipeline_mode = #tpu.pipeline_mode<synchronous>, transform_indices = @transform_3, window_bounds = array<i64: 156, 64>}, {transform_indices = @transform_4, window_bounds = array<i64: 1, 8, 1>}, {transform_indices = @transform_5, window_bounds = array<i64: 1, 16, 64>}]} {
    %c0 = arith.constant 0 : index
    %c0_0 = arith.constant 0 : index
    %0 = vector.load %arg5[%c0, %c0_0] : memref<156x64xf32, #tpu.memory_space<vmem>>, vector<16x1xf32>
    %c16 = arith.constant 16 : index
    %c0_1 = arith.constant 0 : index
    %1 = vector.load %arg5[%c16, %c0_1] : memref<156x64xf32, #tpu.memory_space<vmem>>, vector<16x1xf32>
    %c32 = arith.constant 32 : index
    %c0_2 = arith.constant 0 : index
    %2 = vector.load %arg5[%c32, %c0_2] : memref<156x64xf32, #tpu.memory_space<vmem>>, vector<16x1xf32>
    %c48 = arith.constant 48 : index
    %c0_3 = arith.constant 0 : index
    %3 = vector.load %arg5[%c48, %c0_3] : memref<156x64xf32, #tpu.memory_space<vmem>>, vector<16x1xf32>
    %c64 = arith.constant 64 : index
    %c0_4 = arith.constant 0 : index
    %4 = vector.load %arg5[%c64, %c0_4] : memref<156x64xf32, #tpu.memory_space<vmem>>, vector<16x1xf32>
    %c80 = arith.constant 80 : index
    %c0_5 = arith.constant 0 : index
    %5 = vector.load %arg5[%c80, %c0_5] : memref<156x64xf32, #tpu.memory_space<vmem>>, vector<16x1xf32>
    %c96 = arith.constant 96 : index
    %c0_6 = arith.constant 0 : index
    %6 = vector.load %arg5[%c96, %c0_6] : memref<156x64xf32, #tpu.memory_space<vmem>>, vector<32x1xf32>
    %c128 = arith.constant 128 : index
    %c0_7 = arith.constant 0 : index
    %7 = vector.load %arg5[%c128, %c0_7] : memref<156x64xf32, #tpu.memory_space<vmem>>, vector<16x1xf32>
    %c144 = arith.constant 144 : index
    %c0_8 = arith.constant 0 : index
    %8 = vector.load %arg5[%c144, %c0_8] : memref<156x64xf32, #tpu.memory_space<vmem>>, vector<8x64xf32>
    %c152 = arith.constant 152 : index
    %c0_9 = arith.constant 0 : index
    %9 = vector.load %arg5[%c152, %c0_9] : memref<156x64xf32, #tpu.memory_space<vmem>>, vector<4x64xf32>
    %c0_10 = arith.constant 0 : index
    %c0_11 = arith.constant 0 : index
    %c0_12 = arith.constant 0 : index
    %c0_13 = arith.constant 0 : index
    %10 = vector.load %arg2[%c0_10, %c0_11, %c0_12, %c0_13] : memref<1x4x16x64xbf16, #tpu.memory_space<vmem>>, vector<1x1x16x64xbf16>
    %11 = vector.shape_cast %10 : vector<1x1x16x64xbf16> to vector<16x64xbf16>
    %12 = arith.extf %11 : vector<16x64xbf16> to vector<16x64xf32>
    %c0_14 = arith.constant 0 : index
    %c1 = arith.constant 1 : index
    %c0_15 = arith.constant 0 : index
    %c0_16 = arith.constant 0 : index
    %13 = vector.load %arg2[%c0_14, %c1, %c0_15, %c0_16] : memref<1x4x16x64xbf16, #tpu.memory_space<vmem>>, vector<1x1x16x64xbf16>
    %14 = vector.shape_cast %13 : vector<1x1x16x64xbf16> to vector<16x64xbf16>
    %15 = arith.extf %14 : vector<16x64xbf16> to vector<16x64xf32>
    %c0_17 = arith.constant 0 : index
    %c2 = arith.constant 2 : index
    %c0_18 = arith.constant 0 : index
    %c0_19 = arith.constant 0 : index
    %16 = vector.load %arg2[%c0_17, %c2, %c0_18, %c0_19] : memref<1x4x16x64xbf16, #tpu.memory_space<vmem>>, vector<1x1x16x64xbf16>
    %17 = vector.shape_cast %16 : vector<1x1x16x64xbf16> to vector<16x64xbf16>
    %18 = arith.extf %17 : vector<16x64xbf16> to vector<16x64xf32>
    %c0_20 = arith.constant 0 : index
    %c3 = arith.constant 3 : index
    %c0_21 = arith.constant 0 : index
    %c0_22 = arith.constant 0 : index
    %19 = vector.load %arg2[%c0_20, %c3, %c0_21, %c0_22] : memref<1x4x16x64xbf16, #tpu.memory_space<vmem>>, vector<1x1x16x64xbf16>
    %20 = vector.shape_cast %19 : vector<1x1x16x64xbf16> to vector<16x64xbf16>
    %21 = arith.extf %20 : vector<16x64xbf16> to vector<16x64xf32>
    %22 = tpu.concatenate %12, %15, %18, %21 in 0 : vector<16x64xf32>, vector<16x64xf32>, vector<16x64xf32>, vector<16x64xf32> -> vector<64x64xf32>
    %cst = arith.constant dense<0.000000e+00> : vector<4x64xf32>
    %23 = tpu.matmul %9, %22, %cst {dimension_numbers = #tpu.dot_dimension_numbers<[1], [0], [0], [1], [0, 0, 1, 1], [], []>} : vector<4x64xf32>, vector<64x64xf32>, vector<4x64xf32> -> vector<4x64xf32>
    %24 = arith.mulf %22, %22 : vector<64x64xf32>
    %cst_23 = arith.constant dense<0.000000e+00> : vector<4x64xf32>
    %25 = tpu.matmul %9, %24, %cst_23 {dimension_numbers = #tpu.dot_dimension_numbers<[1], [0], [0], [1], [0, 0, 1, 1], [], []>} : vector<4x64xf32>, vector<64x64xf32>, vector<4x64xf32> -> vector<4x64xf32>
    %26 = arith.mulf %23, %23 : vector<4x64xf32>
    %27 = arith.subf %25, %26 : vector<4x64xf32>
    %cst_24 = arith.constant 9.99999974E-6 : f32
    %28 = vector.broadcast %cst_24 : f32 to vector<4x64xf32>
    %29 = arith.addf %27, %28 : vector<4x64xf32>
    %30 = math.rsqrt %29 : vector<4x64xf32>
    %31 = vector.extract_strided_slice %22 {offsets = [0, 0], sizes = [16, 64], strides = [1, 1]} : vector<64x64xf32> to vector<16x64xf32>
    %32 = vector.extract_strided_slice %23 {offsets = [0, 0], sizes = [1, 64], strides = [1, 1]} : vector<4x64xf32> to vector<1x64xf32>
    %33 = vector.broadcast %32 : vector<1x64xf32> to vector<16x64xf32>
    %34 = arith.subf %31, %33 : vector<16x64xf32>
    %35 = vector.extract_strided_slice %30 {offsets = [0, 0], sizes = [1, 64], strides = [1, 1]} : vector<4x64xf32> to vector<1x64xf32>
    %36 = vector.broadcast %35 : vector<1x64xf32> to vector<16x64xf32>
    %37 = arith.mulf %34, %36 : vector<16x64xf32>
    %38 = vector.broadcast %0 : vector<16x1xf32> to vector<16x64xf32>
    %39 = arith.mulf %37, %38 : vector<16x64xf32>
    %40 = vector.broadcast %1 : vector<16x1xf32> to vector<16x64xf32>
    %41 = arith.addf %39, %40 : vector<16x64xf32>
    %42 = vector.extract_strided_slice %22 {offsets = [16, 0], sizes = [16, 64], strides = [1, 1]} : vector<64x64xf32> to vector<16x64xf32>
    %43 = vector.extract_strided_slice %23 {offsets = [1, 0], sizes = [1, 64], strides = [1, 1]} : vector<4x64xf32> to vector<1x64xf32>
    %44 = vector.broadcast %43 : vector<1x64xf32> to vector<16x64xf32>
    %45 = arith.subf %42, %44 : vector<16x64xf32>
    %46 = vector.extract_strided_slice %30 {offsets = [1, 0], sizes = [1, 64], strides = [1, 1]} : vector<4x64xf32> to vector<1x64xf32>
    %47 = vector.broadcast %46 : vector<1x64xf32> to vector<16x64xf32>
    %48 = arith.mulf %45, %47 : vector<16x64xf32>
    %49 = vector.broadcast %0 : vector<16x1xf32> to vector<16x64xf32>
    %50 = arith.mulf %48, %49 : vector<16x64xf32>
    %51 = vector.broadcast %1 : vector<16x1xf32> to vector<16x64xf32>
    %52 = arith.addf %50, %51 : vector<16x64xf32>
    %53 = vector.extract_strided_slice %22 {offsets = [32, 0], sizes = [16, 64], strides = [1, 1]} : vector<64x64xf32> to vector<16x64xf32>
    %54 = vector.extract_strided_slice %23 {offsets = [2, 0], sizes = [1, 64], strides = [1, 1]} : vector<4x64xf32> to vector<1x64xf32>
    %55 = vector.broadcast %54 : vector<1x64xf32> to vector<16x64xf32>
    %56 = arith.subf %53, %55 : vector<16x64xf32>
    %57 = vector.extract_strided_slice %30 {offsets = [2, 0], sizes = [1, 64], strides = [1, 1]} : vector<4x64xf32> to vector<1x64xf32>
    %58 = vector.broadcast %57 : vector<1x64xf32> to vector<16x64xf32>
    %59 = arith.mulf %56, %58 : vector<16x64xf32>
    %60 = vector.broadcast %0 : vector<16x1xf32> to vector<16x64xf32>
    %61 = arith.mulf %59, %60 : vector<16x64xf32>
    %62 = vector.broadcast %1 : vector<16x1xf32> to vector<16x64xf32>
    %63 = arith.addf %61, %62 : vector<16x64xf32>
    %64 = vector.extract_strided_slice %22 {offsets = [48, 0], sizes = [16, 64], strides = [1, 1]} : vector<64x64xf32> to vector<16x64xf32>
    %65 = vector.extract_strided_slice %23 {offsets = [3, 0], sizes = [1, 64], strides = [1, 1]} : vector<4x64xf32> to vector<1x64xf32>
    %66 = vector.broadcast %65 : vector<1x64xf32> to vector<16x64xf32>
    %67 = arith.subf %64, %66 : vector<16x64xf32>
    %68 = vector.extract_strided_slice %30 {offsets = [3, 0], sizes = [1, 64], strides = [1, 1]} : vector<4x64xf32> to vector<1x64xf32>
    %69 = vector.broadcast %68 : vector<1x64xf32> to vector<16x64xf32>
    %70 = arith.mulf %67, %69 : vector<16x64xf32>
    %71 = vector.broadcast %0 : vector<16x1xf32> to vector<16x64xf32>
    %72 = arith.mulf %70, %71 : vector<16x64xf32>
    %73 = vector.broadcast %1 : vector<16x1xf32> to vector<16x64xf32>
    %74 = arith.addf %72, %73 : vector<16x64xf32>
    %75 = tpu.concatenate %41, %52, %63, %74 in 0 : vector<16x64xf32>, vector<16x64xf32>, vector<16x64xf32>, vector<16x64xf32> -> vector<64x64xf32>
    %76 = arith.truncf %75 : vector<64x64xf32> to vector<64x64xbf16>
    %c0_25 = arith.constant 0 : index
    %c0_26 = arith.constant 0 : index
    %77 = vector.load %arg3[%c0_25, %c0_26] : memref<144x64xbf16, #tpu.memory_space<vmem>>, vector<144x64xbf16>
    %cst_27 = arith.constant dense<0.000000e+00> : vector<144x64xf32>
    %78 = tpu.matmul %77, %76, %cst_27 {dimension_numbers = #tpu.dot_dimension_numbers<[1], [0], [0], [1], [0, 0, 1, 1], [], []>} : vector<144x64xbf16>, vector<64x64xbf16>, vector<144x64xf32> -> vector<144x64xf32>
    %c0_28 = arith.constant 0 : index
    %c0_29 = arith.constant 0 : index
    %79 = vector.load %arg8[%c0_28, %c0_29] : memref<144x64xf32, #tpu.memory_space<vmem>>, vector<144x64xf32>
    tpu.vector_store %arg8[%c0_28, %c0_29], %78 {strides = array<i32>} : memref<144x64xf32, #tpu.memory_space<vmem>>, vector<144x64xf32>,
    %c0_30 = arith.constant 0 : index
    %c0_31 = arith.constant 0 : index
    %80 = vector.load %arg8[%c0_30, %c0_31] : memref<144x64xf32, #tpu.memory_space<vmem>>, vector<16x64xf32>
    %c16_32 = arith.constant 16 : index
    %c0_33 = arith.constant 0 : index
    %81 = vector.load %arg8[%c16_32, %c0_33] : memref<144x64xf32, #tpu.memory_space<vmem>>, vector<16x64xf32>
    %82 = arith.mulf %80, %81 : vector<16x64xf32>
    %c32_34 = arith.constant 32 : index
    %c0_35 = arith.constant 0 : index
    %83 = vector.load %arg8[%c32_34, %c0_35] : memref<144x64xf32, #tpu.memory_space<vmem>>, vector<16x64xf32>
    %84 = arith.mulf %80, %83 : vector<16x64xf32>
    %c48_36 = arith.constant 48 : index
    %c0_37 = arith.constant 0 : index
    %85 = vector.load %arg8[%c48_36, %c0_37] : memref<144x64xf32, #tpu.memory_space<vmem>>, vector<16x64xf32>
    %86 = arith.mulf %80, %85 : vector<16x64xf32>
    %c64_38 = arith.constant 64 : index
    %c0_39 = arith.constant 0 : index
    %87 = vector.load %arg8[%c64_38, %c0_39] : memref<144x64xf32, #tpu.memory_space<vmem>>, vector<16x64xf32>
    %88 = arith.mulf %80, %87 : vector<16x64xf32>
    %89 = tpu.concatenate %82, %84, %86, %88 in 0 : vector<16x64xf32>, vector<16x64xf32>, vector<16x64xf32>, vector<16x64xf32> -> vector<64x64xf32>
    %cst_40 = arith.constant dense<0.000000e+00> : vector<8x64xf32>
    %90 = tpu.matmul %8, %89, %cst_40 {dimension_numbers = #tpu.dot_dimension_numbers<[1], [0], [0], [1], [0, 0, 1, 1], [], []>} : vector<8x64xf32>, vector<64x64xf32>, vector<8x64xf32> -> vector<8x64xf32>
    %c0_41 = arith.constant 0 : index
    %c0_42 = arith.constant 0 : index
    %c0_43 = arith.constant 0 : index
    %91 = vector.load %arg6[%c0_41, %c0_42, %c0_43] : memref<1x8x1xf32, #tpu.memory_space<vmem>>, vector<1x8x1xf32>
    %92 = vector.shape_cast %91 : vector<1x8x1xf32> to vector<8x1xf32>
    %93 = vector.broadcast %92 : vector<8x1xf32> to vector<8x64xf32>
    %94 = arith.addf %90, %93 : vector<8x64xf32>
    %95 = vector.extract_strided_slice %94 {offsets = [0, 0], sizes = [4, 64], strides = [1, 1]} : vector<8x64xf32> to vector<4x64xf32>
    %96 = vector.extract_strided_slice %94 {offsets = [4, 0], sizes = [4, 64], strides = [1, 1]} : vector<8x64xf32> to vector<4x64xf32>
    %cst_44 = arith.constant dense<0xFF800000> : vector<64xf32>
    %97 = vector.multi_reduction <maximumf>, %95, %cst_44 [0] : vector<4x64xf32> to vector<64xf32>
    %98 = vector.shape_cast %97 : vector<64xf32> to vector<1x64xf32>
    %99 = vector.broadcast %98 : vector<1x64xf32> to vector<4x64xf32>
    %100 = arith.subf %95, %99 : vector<4x64xf32>
    %101 = math.exp %100 : vector<4x64xf32>
    %cst_45 = arith.constant dense<0xFF800000> : vector<64xf32>
    %102 = vector.multi_reduction <maximumf>, %96, %cst_45 [0] : vector<4x64xf32> to vector<64xf32>
    %103 = vector.shape_cast %102 : vector<64xf32> to vector<1x64xf32>
    %104 = vector.broadcast %103 : vector<1x64xf32> to vector<4x64xf32>
    %105 = arith.subf %96, %104 : vector<4x64xf32>
    %106 = math.exp %105 : vector<4x64xf32>
    %cst_46 = arith.constant dense<0.000000e+00> : vector<64xf32>
    %107 = vector.multi_reduction <add>, %101, %cst_46 [0] : vector<4x64xf32> to vector<64xf32>
    %108 = vector.shape_cast %107 : vector<64xf32> to vector<1x64xf32>
    %109 = tpu.reciprocal %108 {approx = true} : vector<1x64xf32> -> vector<1x64xf32>
    %cst_47 = arith.constant dense<0.000000e+00> : vector<64xf32>
    %110 = vector.multi_reduction <add>, %106, %cst_47 [0] : vector<4x64xf32> to vector<64xf32>
    %111 = vector.shape_cast %110 : vector<64xf32> to vector<1x64xf32>
    %112 = tpu.reciprocal %111 {approx = true} : vector<1x64xf32> -> vector<1x64xf32>
    %113 = vector.extract_strided_slice %101 {offsets = [0, 0], sizes = [1, 64], strides = [1, 1]} : vector<4x64xf32> to vector<1x64xf32>
    %c80_48 = arith.constant 80 : index
    %c0_49 = arith.constant 0 : index
    %114 = vector.load %arg8[%c80_48, %c0_49] : memref<144x64xf32, #tpu.memory_space<vmem>>, vector<8x64xf32>
    %115 = vector.broadcast %113 : vector<1x64xf32> to vector<8x64xf32>
    %116 = arith.mulf %115, %114 : vector<8x64xf32>
    %117 = vector.extract_strided_slice %106 {offsets = [0, 0], sizes = [1, 64], strides = [1, 1]} : vector<4x64xf32> to vector<1x64xf32>
    %c88 = arith.constant 88 : index
    %c0_50 = arith.constant 0 : index
    %118 = vector.load %arg8[%c88, %c0_50] : memref<144x64xf32, #tpu.memory_space<vmem>>, vector<8x64xf32>
    %119 = vector.broadcast %117 : vector<1x64xf32> to vector<8x64xf32>
    %120 = arith.mulf %119, %118 : vector<8x64xf32>
    %121 = vector.extract_strided_slice %101 {offsets = [1, 0], sizes = [1, 64], strides = [1, 1]} : vector<4x64xf32> to vector<1x64xf32>
    %c96_51 = arith.constant 96 : index
    %c0_52 = arith.constant 0 : index
    %122 = vector.load %arg8[%c96_51, %c0_52] : memref<144x64xf32, #tpu.memory_space<vmem>>, vector<8x64xf32>
    %123 = vector.broadcast %121 : vector<1x64xf32> to vector<8x64xf32>
    %124 = arith.mulf %123, %122 : vector<8x64xf32>
    %125 = arith.addf %116, %124 : vector<8x64xf32>
    %126 = vector.extract_strided_slice %106 {offsets = [1, 0], sizes = [1, 64], strides = [1, 1]} : vector<4x64xf32> to vector<1x64xf32>
    %c104 = arith.constant 104 : index
    %c0_53 = arith.constant 0 : index
    %127 = vector.load %arg8[%c104, %c0_53] : memref<144x64xf32, #tpu.memory_space<vmem>>, vector<8x64xf32>
    %128 = vector.broadcast %126 : vector<1x64xf32> to vector<8x64xf32>
    %129 = arith.mulf %128, %127 : vector<8x64xf32>
    %130 = arith.addf %120, %129 : vector<8x64xf32>
    %131 = vector.extract_strided_slice %101 {offsets = [2, 0], sizes = [1, 64], strides = [1, 1]} : vector<4x64xf32> to vector<1x64xf32>
    %c112 = arith.constant 112 : index
    %c0_54 = arith.constant 0 : index
    %132 = vector.load %arg8[%c112, %c0_54] : memref<144x64xf32, #tpu.memory_space<vmem>>, vector<8x64xf32>
    %133 = vector.broadcast %131 : vector<1x64xf32> to vector<8x64xf32>
    %134 = arith.mulf %133, %132 : vector<8x64xf32>
    %135 = arith.addf %125, %134 : vector<8x64xf32>
    %136 = vector.extract_strided_slice %106 {offsets = [2, 0], sizes = [1, 64], strides = [1, 1]} : vector<4x64xf32> to vector<1x64xf32>
    %c120 = arith.constant 120 : index
    %c0_55 = arith.constant 0 : index
    %137 = vector.load %arg8[%c120, %c0_55] : memref<144x64xf32, #tpu.memory_space<vmem>>, vector<8x64xf32>
    %138 = vector.broadcast %136 : vector<1x64xf32> to vector<8x64xf32>
    %139 = arith.mulf %138, %137 : vector<8x64xf32>
    %140 = arith.addf %130, %139 : vector<8x64xf32>
    %141 = vector.extract_strided_slice %101 {offsets = [3, 0], sizes = [1, 64], strides = [1, 1]} : vector<4x64xf32> to vector<1x64xf32>
    %c128_56 = arith.constant 128 : index
    %c0_57 = arith.constant 0 : index
    %142 = vector.load %arg8[%c128_56, %c0_57] : memref<144x64xf32, #tpu.memory_space<vmem>>, vector<8x64xf32>
    %143 = vector.broadcast %141 : vector<1x64xf32> to vector<8x64xf32>
    %144 = arith.mulf %143, %142 : vector<8x64xf32>
    %145 = arith.addf %135, %144 : vector<8x64xf32>
    %146 = vector.extract_strided_slice %106 {offsets = [3, 0], sizes = [1, 64], strides = [1, 1]} : vector<4x64xf32> to vector<1x64xf32>
    %c136 = arith.constant 136 : index
    %c0_58 = arith.constant 0 : index
    %147 = vector.load %arg8[%c136, %c0_58] : memref<144x64xf32, #tpu.memory_space<vmem>>, vector<8x64xf32>
    %148 = vector.broadcast %146 : vector<1x64xf32> to vector<8x64xf32>
    %149 = arith.mulf %148, %147 : vector<8x64xf32>
    %150 = arith.addf %140, %149 : vector<8x64xf32>
    %151 = vector.broadcast %109 : vector<1x64xf32> to vector<8x64xf32>
    %152 = arith.mulf %145, %151 : vector<8x64xf32>
    %153 = vector.broadcast %112 : vector<1x64xf32> to vector<8x64xf32>
    %154 = arith.mulf %150, %153 : vector<8x64xf32>
    %155 = tpu.concatenate %152, %154 in 0 : vector<8x64xf32>, vector<8x64xf32> -> vector<16x64xf32>
    %156 = arith.truncf %155 : vector<16x64xf32> to vector<16x64xbf16>
    %c0_59 = arith.constant 0 : index
    %c0_60 = arith.constant 0 : index
    %157 = vector.load %arg4[%c0_59, %c0_60] : memref<64x32xbf16, #tpu.memory_space<vmem>>, vector<16x16xbf16>
    %c0_61 = arith.constant 0 : index
    %c0_62 = arith.constant 0 : index
    %c0_63 = arith.constant 0 : index
    %c0_64 = arith.constant 0 : index
    %158 = vector.load %arg2[%c0_61, %c0_62, %c0_63, %c0_64] : memref<1x4x16x64xbf16, #tpu.memory_space<vmem>>, vector<1x1x16x64xbf16>
    %159 = vector.shape_cast %158 : vector<1x1x16x64xbf16> to vector<16x64xbf16>
    %160 = arith.extf %159 : vector<16x64xbf16> to vector<16x64xf32>
    %cst_65 = arith.constant dense<0.000000e+00> : vector<16x64xf32>
    %161 = tpu.matmul %157, %156, %cst_65 {dimension_numbers = #tpu.dot_dimension_numbers<[1], [0], [0], [1], [0, 0, 1, 1], [], []>} : vector<16x16xbf16>, vector<16x64xbf16>, vector<16x64xf32> -> vector<16x64xf32>
    %162 = arith.addf %160, %161 : vector<16x64xf32>
    %cst_66 = arith.constant dense<0.000000e+00> : vector<64xf32>
    %163 = vector.multi_reduction <add>, %162, %cst_66 [0] : vector<16x64xf32> to vector<64xf32>
    %164 = vector.shape_cast %163 : vector<64xf32> to vector<1x64xf32>
    %cst_67 = arith.constant 1.600000e+01 : f32
    %165 = vector.broadcast %cst_67 : f32 to vector<1x64xf32>
    %166 = arith.divf %164, %165 : vector<1x64xf32>
    %167 = arith.mulf %162, %162 : vector<16x64xf32>
    %cst_68 = arith.constant dense<0.000000e+00> : vector<64xf32>
    %168 = vector.multi_reduction <add>, %167, %cst_68 [0] : vector<16x64xf32> to vector<64xf32>
    %169 = vector.shape_cast %168 : vector<64xf32> to vector<1x64xf32>
    %cst_69 = arith.constant 1.600000e+01 : f32
    %170 = vector.broadcast %cst_69 : f32 to vector<1x64xf32>
    %171 = arith.divf %169, %170 : vector<1x64xf32>
    %172 = arith.mulf %166, %166 : vector<1x64xf32>
    %173 = arith.subf %171, %172 : vector<1x64xf32>
    %cst_70 = arith.constant 9.99999974E-6 : f32
    %174 = vector.broadcast %cst_70 : f32 to vector<1x64xf32>
    %175 = arith.addf %173, %174 : vector<1x64xf32>
    %176 = math.rsqrt %175 : vector<1x64xf32>
    %177 = vector.broadcast %166 : vector<1x64xf32> to vector<16x64xf32>
    %178 = arith.subf %162, %177 : vector<16x64xf32>
    %179 = vector.broadcast %176 : vector<1x64xf32> to vector<16x64xf32>
    %180 = arith.mulf %178, %179 : vector<16x64xf32>
    %181 = vector.broadcast %2 : vector<16x1xf32> to vector<16x64xf32>
    %182 = arith.mulf %180, %181 : vector<16x64xf32>
    %183 = vector.broadcast %3 : vector<16x1xf32> to vector<16x64xf32>
    %184 = arith.addf %182, %183 : vector<16x64xf32>
    %185 = arith.truncf %184 : vector<16x64xf32> to vector<16x64xbf16>
    %c16_71 = arith.constant 16 : index
    %c0_72 = arith.constant 0 : index
    %186 = vector.load %arg4[%c16_71, %c0_72] : memref<64x32xbf16, #tpu.memory_space<vmem>>, vector<32x16xbf16>
    %cst_73 = arith.constant dense<0.000000e+00> : vector<32x64xf32>
    %187 = tpu.matmul %186, %185, %cst_73 {dimension_numbers = #tpu.dot_dimension_numbers<[1], [0], [0], [1], [0, 0, 1, 1], [], []>} : vector<32x16xbf16>, vector<16x64xbf16>, vector<32x64xf32> -> vector<32x64xf32>
    %188 = vector.broadcast %6 : vector<32x1xf32> to vector<32x64xf32>
    %189 = arith.addf %187, %188 : vector<32x64xf32>
    %190 = arith.mulf %189, %189 : vector<32x64xf32>
    %191 = arith.mulf %189, %190 : vector<32x64xf32>
    %cst_74 = arith.constant 4.471500e-02 : f32
    %192 = vector.broadcast %cst_74 : f32 to vector<32x64xf32>
    %193 = arith.mulf %192, %191 : vector<32x64xf32>
    %194 = arith.addf %189, %193 : vector<32x64xf32>
    %cst_75 = arith.constant 0.797884583 : f32
    %195 = vector.broadcast %cst_75 : f32 to vector<32x64xf32>
    %196 = arith.mulf %195, %194 : vector<32x64xf32>
    %197 = math.tanh %196 : vector<32x64xf32>
    %cst_76 = arith.constant 1.000000e+00 : f32
    %198 = vector.broadcast %cst_76 : f32 to vector<32x64xf32>
    %199 = arith.addf %198, %197 : vector<32x64xf32>
    %cst_77 = arith.constant 5.000000e-01 : f32
    %200 = vector.broadcast %cst_77 : f32 to vector<32x64xf32>
    %201 = arith.mulf %200, %199 : vector<32x64xf32>
    %202 = arith.mulf %189, %201 : vector<32x64xf32>
    %203 = arith.truncf %202 : vector<32x64xf32> to vector<32x64xbf16>
    %c48_78 = arith.constant 48 : index
    %c0_79 = arith.constant 0 : index
    %204 = vector.load %arg4[%c48_78, %c0_79] : memref<64x32xbf16, #tpu.memory_space<vmem>>, vector<16x32xbf16>
    %cst_80 = arith.constant dense<0.000000e+00> : vector<16x64xf32>
    %205 = tpu.matmul %204, %203, %cst_80 {dimension_numbers = #tpu.dot_dimension_numbers<[1], [0], [0], [1], [0, 0, 1, 1], [], []>} : vector<16x32xbf16>, vector<32x64xbf16>, vector<16x64xf32> -> vector<16x64xf32>
    %206 = arith.addf %162, %205 : vector<16x64xf32>
    %207 = vector.broadcast %7 : vector<16x1xf32> to vector<16x64xf32>
    %208 = arith.addf %206, %207 : vector<16x64xf32>
    %cst_81 = arith.constant dense<0.000000e+00> : vector<64xf32>
    %209 = vector.multi_reduction <add>, %208, %cst_81 [0] : vector<16x64xf32> to vector<64xf32>
    %210 = vector.shape_cast %209 : vector<64xf32> to vector<1x64xf32>
    %cst_82 = arith.constant 1.600000e+01 : f32
    %211 = vector.broadcast %cst_82 : f32 to vector<1x64xf32>
    %212 = arith.divf %210, %211 : vector<1x64xf32>
    %213 = arith.mulf %208, %208 : vector<16x64xf32>
    %cst_83 = arith.constant dense<0.000000e+00> : vector<64xf32>
    %214 = vector.multi_reduction <add>, %213, %cst_83 [0] : vector<16x64xf32> to vector<64xf32>
    %215 = vector.shape_cast %214 : vector<64xf32> to vector<1x64xf32>
    %cst_84 = arith.constant 1.600000e+01 : f32
    %216 = vector.broadcast %cst_84 : f32 to vector<1x64xf32>
    %217 = arith.divf %215, %216 : vector<1x64xf32>
    %218 = arith.mulf %212, %212 : vector<1x64xf32>
    %219 = arith.subf %217, %218 : vector<1x64xf32>
    %cst_85 = arith.constant 9.99999974E-6 : f32
    %220 = vector.broadcast %cst_85 : f32 to vector<1x64xf32>
    %221 = arith.addf %219, %220 : vector<1x64xf32>
    %222 = math.rsqrt %221 : vector<1x64xf32>
    %223 = vector.broadcast %212 : vector<1x64xf32> to vector<16x64xf32>
    %224 = arith.subf %208, %223 : vector<16x64xf32>
    %225 = vector.broadcast %222 : vector<1x64xf32> to vector<16x64xf32>
    %226 = arith.mulf %224, %225 : vector<16x64xf32>
    %227 = vector.broadcast %4 : vector<16x1xf32> to vector<16x64xf32>
    %228 = arith.mulf %226, %227 : vector<16x64xf32>
    %229 = vector.broadcast %5 : vector<16x1xf32> to vector<16x64xf32>
    %230 = arith.addf %228, %229 : vector<16x64xf32>
    %c0_86 = arith.constant 0 : index
    %c0_87 = arith.constant 0 : index
    %c0_88 = arith.constant 0 : index
    %231 = vector.load %arg7[%c0_86, %c0_87, %c0_88] : memref<1x16x64xf32, #tpu.memory_space<vmem>>, vector<1x16x64xf32>
    %232 = vector.shape_cast %231 : vector<1x16x64xf32> to vector<16x64xf32>
    %233 = vector.shape_cast %230 : vector<16x64xf32> to vector<1x16x64xf32>
    tpu.vector_store %arg7[%c0_86, %c0_87, %c0_88], %233 {strides = array<i32>} : memref<1x16x64xf32, #tpu.memory_space<vmem>>, vector<1x16x64xf32>,
    return
  }
  func.func @transform_0(%arg0: i32, %arg1: i32) -> (i32, i32, i32, i32) {
    %c0_i32 = arith.constant 0 : i32
    %c0_i32_0 = arith.constant 0 : i32
    %c0_i32_1 = arith.constant 0 : i32
    return %arg0, %c0_i32, %c0_i32_0, %arg1 : i32, i32, i32, i32
  }
  func.func @transform_1(%arg0: i32, %arg1: i32) -> (i32, i32) {
    %c0_i32 = arith.constant 0 : i32
    %c0_i32_0 = arith.constant 0 : i32
    %c0_i32_1 = arith.constant 0 : i32
    return %c0_i32, %c0_i32_0 : i32, i32
  }
  func.func @transform_2(%arg0: i32, %arg1: i32) -> (i32, i32) {
    %c0_i32 = arith.constant 0 : i32
    %c0_i32_0 = arith.constant 0 : i32
    %c0_i32_1 = arith.constant 0 : i32
    return %c0_i32, %c0_i32_0 : i32, i32
  }
  func.func @transform_3(%arg0: i32, %arg1: i32) -> (i32, i32) {
    %c0_i32 = arith.constant 0 : i32
    %c0_i32_0 = arith.constant 0 : i32
    %c0_i32_1 = arith.constant 0 : i32
    return %c0_i32, %c0_i32_0 : i32, i32
  }
  func.func @transform_4(%arg0: i32, %arg1: i32) -> (i32, i32, i32) {
    %c0_i32 = arith.constant 0 : i32
    %c0_i32_0 = arith.constant 0 : i32
    %c0_i32_1 = arith.constant 0 : i32
    return %arg0, %c0_i32, %c0_i32_0 : i32, i32, i32
  }
  func.func @transform_5(%arg0: i32, %arg1: i32) -> (i32, i32, i32) {
    %c0_i32 = arith.constant 0 : i32
    %c0_i32_0 = arith.constant 0 : i32
    return %arg0, %c0_i32, %arg1 : i32, i32, i32
  }
}

</mosaic_0001>

<llo_original>
// kernel: tpu_custom_call.1
$region0: #{tpu_custom_call.1}
  #allocation0 [shape = 'u32[]', space=smem, size = 0x4, offset = 0x4, fixed_abs, tag = 'smem constant byte address 0x4 - core index']
  #allocation1 [shape = 'u32[72,128]{1,0:T(1,128)}', space=vmem, size = 0x9000, scoped, tag = 'internal scratch']
  #allocation2 [shape = 'f32[144,64]{1,0:T(8,128)}', space=vmem, size = 0x12000, scoped, tag = 'scratch operand']
  %s0 = inlined_call_operand.vmem [shape: bf16[2,4,16,64], index: 0, kind: input, shape index: {}]
  %s1 = inlined_call_operand.vmem [shape: bf16[144,64], index: 1, kind: input, shape index: {}]
  %s2 = inlined_call_operand.vmem [shape: bf16[64,32], index: 2, kind: input, shape index: {}]
  %s3 = inlined_call_operand.vmem [shape: f32[156,64], index: 3, kind: input, shape index: {}]
  %s4 = inlined_call_operand.vmem [shape: f32[2,8,1], index: 4, kind: input, shape index: {}]
  %s5 = inlined_call_operand.hbm [shape: f32[2,16,64], index: 5, kind: output, shape index: {}]
  %s6 = sld [smem:[#allocation0]]
  $region53: #{tpu_custom_call.1} parent=0
    _
  %s8 = ssub.s32 1, %s6
  %s9 = scalar_select 0, %s8, %s6
  $region1: #{tpu_custom_call.1} parent=0
    #allocation3 [shape = 'u8[16384]{0}', space=vmem, size = 0x4000, scoped, tag = 'output window, operand 0']
    #allocation4 [shape = 's32[2]{0}', space=sflag, size = 0x8, scoped, tag = 'scoped memory for tpu_custom_call.1']
    %10 = vsyncpa [#allocation4], 0
    %s11 = scalar_lea.sflag [#allocation4], 1
    %12 = vsyncpa %s11, 0
    loop: start=0, step=1, limit=4
    $region2: #{tpu_custom_call.1} parent=1 // loop_pre_header
      _
    $region3: #{tpu_custom_call.1} parent=1 // loop_header
      %s14 = sphi 0, %s18
      %p15 = scmp.ge.s32.totalorder %s14, 4
      %s21 = sphi 0, %s33
      %s22 = sphi 0, %s29
      %s23 = sphi 0, %s21
      %s24 = sphi 0, %s22
      %s25 = sphi 0, %s23
      %s26 = sphi 0, %s24
      %s38 = sphi 0, %s40
      %s41 = sphi 0, %s38
      %s42 = sphi 0, %s41
      %s58 = sphi 0, %s42
      %s62 = sphi 0, %s62
      %s64 = sphi 0, %s62
      %s65 = sphi 0, %s64
      %s79 = sphi 0, %s65
      %s83 = sphi 0, %s83
      %s85 = sphi 0, %s83
      %s86 = sphi 0, %s85
      %s100 = sphi 0, %s86
      %s104 = sphi 0, %s104
      %s106 = sphi 0, %s104
      %s107 = sphi 0, %s106
      %s121 = sphi 0, %s107
      %s127 = sphi 0, %s129
      %s130 = sphi 0, %s127
      %s131 = sphi 0, %s130
      %s147 = sphi 0, %s131
      %s155 = sphi 0, %s157
      %s158 = sphi 0, %s155
      %s159 = sphi 0, %s158
      %s175 = sphi 0, %s159
    $region4: #{tpu_custom_call.1} parent=1 // loop_header_branch
      %17 = sbr.rel (%p15) target = $region8
    $region5: #{tpu_custom_call.1} parent=1 // loop_body
      %s19 = ssub.s32 %s14, 1
      %s20 = ssub.s32 %s14, 2
      %s27 = sadd.s32 1, %s22
      %p28 = scmp.ge.s32.totalorder %s27, 1
      %s29 = scalar_select %p28, 0, %s27
      %s30 = sadd.s32 1, %s21
      %s31 = scalar_select %p28, %s30, %s21
      %p32 = scmp.ge.s32.totalorder %s31, 2
      %s33 = scalar_select %p32, 0, %s31
      %s34 = ssub.s32 %s21, %s33
      %s35 = ssub.s32 %s22, %s29
      %s36 = sor.u32 %s34, %s35
      %p37 = scmp.eq.s32.totalorder %s36, 0
      %s39 = sadd.s32 %s38, 1
      %s40 = scalar_select %p37, %s38, %s39
      %p43 = pneg %p37
      %p44 = scmp.eq.s32.totalorder %s14, 1
      %p45 = por %p43, %p44
      %p46 = scmp.ne.s32.totalorder %s38, %s41
      %p47 = scmp.eq.s32.totalorder %s14, 0
      %p48 = por %p46, %p47
      %p49 = scmp.ne.s32.totalorder %s38, %s41
      %p50 = scmp.eq.s32.totalorder %s19, 1
      %p51 = por %p49, %p50
      %p52 = scmp.ne.s32.totalorder %s41, %s42
      %p53 = scmp.eq.s32.totalorder %s19, 0
      %p54 = por %p52, %p53
      %p55 = scmp.ne.s32.totalorder %s41, %s42
      %p56 = scmp.eq.s32.totalorder %s20, 1
      %p57 = por %p55, %p56
      %p59 = scmp.ne.s32.totalorder %s42, %s58
      %p60 = scmp.eq.s32.totalorder %s20, 0
      %p61 = por %p59, %p60
      %s63 = sadd.s32 %s62, 1
      %p66 = scmp.eq.s32.totalorder %s14, 1
      %p67 = scmp.ne.s32.totalorder %s62, %s64
      %p68 = scmp.eq.s32.totalorder %s14, 0
      %p69 = por %p67, %p68
      %p70 = scmp.ne.s32.totalorder %s62, %s64
      %p71 = scmp.eq.s32.totalorder %s19, 1
      %p72 = por %p70, %p71
      %p73 = scmp.ne.s32.totalorder %s64, %s65
      %p74 = scmp.eq.s32.totalorder %s19, 0
      %p75 = por %p73, %p74
      %p76 = scmp.ne.s32.totalorder %s64, %s65
      %p77 = scmp.eq.s32.totalorder %s20, 1
      %p78 = por %p76, %p77
      %p80 = scmp.ne.s32.totalorder %s65, %s79
      %p81 = scmp.eq.s32.totalorder %s20, 0
      %p82 = por %p80, %p81
      %s84 = sadd.s32 %s83, 1
      %p87 = scmp.eq.s32.totalorder %s14, 1
      %p88 = scmp.ne.s32.totalorder %s83, %s85
      %p89 = scmp.eq.s32.totalorder %s14, 0
      %p90 = por %p88, %p89
      %p91 = scmp.ne.s32.totalorder %s83, %s85
      %p92 = scmp.eq.s32.totalorder %s19, 1
      %p93 = por %p91, %p92
      %p94 = scmp.ne.s32.totalorder %s85, %s86
      %p95 = scmp.eq.s32.totalorder %s19, 0
      %p96 = por %p94, %p95
      %p97 = scmp.ne.s32.totalorder %s85, %s86
      %p98 = scmp.eq.s32.totalorder %s20, 1
      %p99 = por %p97, %p98
      %p101 = scmp.ne.s32.totalorder %s86, %s100
      %p102 = scmp.eq.s32.totalorder %s20, 0
      %p103 = por %p101, %p102
      %s105 = sadd.s32 %s104, 1
      %p108 = scmp.eq.s32.totalorder %s14, 1
      %p109 = scmp.ne.s32.totalorder %s104, %s106
      %p110 = scmp.eq.s32.totalorder %s14, 0
      %p111 = por %p109, %p110
      %p112 = scmp.ne.s32.totalorder %s104, %s106
      %p113 = scmp.eq.s32.totalorder %s19, 1
      %p114 = por %p112, %p113
      %p115 = scmp.ne.s32.totalorder %s106, %s107
      %p116 = scmp.eq.s32.totalorder %s19, 0
      %p117 = por %p115, %p116
      %p118 = scmp.ne.s32.totalorder %s106, %s107
      %p119 = scmp.eq.s32.totalorder %s20, 1
      %p120 = por %p118, %p119
      %p122 = scmp.ne.s32.totalorder %s107, %s121
      %p123 = scmp.eq.s32.totalorder %s20, 0
      %p124 = por %p122, %p123
      %s125 = ssub.s32 %s21, %s33
      %p126 = scmp.eq.s32.totalorder %s125, 0
      %s128 = sadd.s32 %s127, 1
      %s129 = scalar_select %p126, %s127, %s128
      %p132 = pneg %p126
      %p133 = scmp.eq.s32.totalorder %s14, 1
      %p134 = por %p132, %p133
      %p135 = scmp.ne.s32.totalorder %s127, %s130
      %p136 = scmp.eq.s32.totalorder %s14, 0
      %p137 = por %p135, %p136
      %p138 = scmp.ne.s32.totalorder %s127, %s130
      %p139 = scmp.eq.s32.totalorder %s19, 1
      %p140 = por %p138, %p139
      %p141 = scmp.ne.s32.totalorder %s130, %s131
      %p142 = scmp.eq.s32.totalorder %s19, 0
      %p143 = por %p141, %p142
      %p144 = scmp.ne.s32.totalorder %s130, %s131
      %p145 = scmp.eq.s32.totalorder %s20, 1
      %p146 = por %p144, %p145
      %p148 = scmp.ne.s32.totalorder %s131, %s147
      %p149 = scmp.eq.s32.totalorder %s20, 0
      %p150 = por %p148, %p149
      %s151 = ssub.s32 %s21, %s33
      %s152 = ssub.s32 %s22, %s29
      %s153 = sor.u32 %s151, %s152
      %p154 = scmp.eq.s32.totalorder %s153, 0
      %s156 = sadd.s32 %s155, 1
      %s157 = scalar_select %p154, %s155, %s156
      %p160 = pneg %p154
      %p161 = scmp.eq.s32.totalorder %s14, 1
      %p162 = por %p160, %p161
      %p163 = scmp.ne.s32.totalorder %s155, %s158
      %p164 = scmp.eq.s32.totalorder %s14, 0
      %p165 = por %p163, %p164
      %p166 = scmp.ne.s32.totalorder %s155, %s158
      %p167 = scmp.eq.s32.totalorder %s19, 1
      %p168 = por %p166, %p167
      %p169 = scmp.ne.s32.totalorder %s158, %s159
      %p170 = scmp.eq.s32.totalorder %s19, 0
      %p171 = por %p169, %p170
      %p172 = scmp.ne.s32.totalorder %s158, %s159
      %p173 = scmp.eq.s32.totalorder %s20, 1
      %p174 = por %p172, %p173
      %p176 = scmp.ne.s32.totalorder %s159, %s175
      %p177 = scmp.eq.s32.totalorder %s20, 0
      %p178 = por %p176, %p177
      %p179 = scmp.le.s32.totalorder 1, %s14
      %p180 = scmp.lt.s32.totalorder %s14, 3
      %p181 = pnand %p179, %p180
      %p182 = pneg %p181
      // Predicated region
      $region9: #{tpu_custom_call.1} parent=5 // pred_check
        _
      $region10: #{tpu_custom_call.1} parent=5 // pred_check_branch
        %184 = sbr.rel (%p181) target = $region12
      $region11: #{tpu_custom_call.1} parent=5 // pred_region
        %s185 = ssub.s32 %s14, 1
        // Predicated region
        $region13: #{tpu_custom_call.1} parent=11 // pred_check
          %p186 = pneg %p75
        $region14: #{tpu_custom_call.1} parent=11 // pred_check_branch
          %188 = sbr.rel (%p186) target = $region16
        $region15: #{tpu_custom_call.1} parent=11 // pred_region
          _
        $region16: #{tpu_custom_call.1} parent=11 // pred_fallthru
          _
        // Predicated region
        $region17: #{tpu_custom_call.1} parent=11 // pred_check
          %p189 = pneg %p96
        $region18: #{tpu_custom_call.1} parent=11 // pred_check_branch
          %191 = sbr.rel (%p189) target = $region20
        $region19: #{tpu_custom_call.1} parent=11 // pred_region
          _
        $region20: #{tpu_custom_call.1} parent=11 // pred_fallthru
          _
        // Predicated region
        $region21: #{tpu_custom_call.1} parent=11 // pred_check
          %p192 = pneg %p117
        $region22: #{tpu_custom_call.1} parent=11 // pred_check_branch
          %194 = sbr.rel (%p192) target = $region24
        $region23: #{tpu_custom_call.1} parent=11 // pred_region
          _
        $region24: #{tpu_custom_call.1} parent=11 // pred_fallthru
          _
      $region12: #{tpu_custom_call.1} parent=5 // pred_fallthru
        _
      %p195 = scmp.lt.s32.totalorder %s14, 2
      // Predicated region
      $region25: #{tpu_custom_call.1} parent=5 // pred_check
        %p196 = pneg %p195
      $region26: #{tpu_custom_call.1} parent=5 // pred_check_branch
        %198 = sbr.rel (%p196) target = $region28
      $region27: #{tpu_custom_call.1} parent=5 // pred_region
        // Predicated region
        $region29: #{tpu_custom_call.1} parent=27 // pred_check
          %p199 = pneg %p48
        $region30: #{tpu_custom_call.1} parent=27 // pred_check_branch
          %201 = sbr.rel (%p199) target = $region32
        $region31: #{tpu_custom_call.1} parent=27 // pred_region
          %p202 = scmp.lt.s32.totalorder %s21, 1
          %s203 = scalar_select %p202, %s21, 1
          %p204 = scmp.lt.s32.totalorder %s22, 0
          %s205 = scalar_select %p204, %s22, 0
          %s206 = smul.addr %s203, 8
          %s207 = sadd.s32 %s205, %s206
          %s208 = smul.addr %s207, 4
          %s209 = scalar_lea.vmem %s0, %s208
        $region32: #{tpu_custom_call.1} parent=27 // pred_fallthru
          _
        // Predicated region
        $region33: #{tpu_custom_call.1} parent=27 // pred_check
          %p210 = pneg %p137
        $region34: #{tpu_custom_call.1} parent=27 // pred_check_branch
          %212 = sbr.rel (%p210) target = $region36
        $region35: #{tpu_custom_call.1} parent=27 // pred_region
          %p213 = scmp.lt.s32.totalorder %s21, 1
          %s214 = scalar_select %p213, %s21, 1
          %s215 = smul.addr %s214, 8
          %s216 = scalar_lea.vmem %s4, %s215
        $region36: #{tpu_custom_call.1} parent=27 // pred_fallthru
          _
      $region28: #{tpu_custom_call.1} parent=5 // pred_fallthru
        _
      %p217 = scmp.le.s32.totalorder 1, %s14
      %p218 = scmp.lt.s32.totalorder %s14, 3
      %p219 = pnand %p217, %p218
      %p220 = pneg %p219
      // Predicated region
      $region37: #{tpu_custom_call.1} parent=5 // pred_check
        _
      $region38: #{tpu_custom_call.1} parent=5 // pred_check_branch
        %222 = sbr.rel (%p219) target = $region40
      $region39: #{tpu_custom_call.1} parent=5 // pred_region
        %s223 = ssub.s32 %s14, 1
        %p224 = scmp.lt.s32.totalorder %s23, 1
        %s225 = scalar_select %p224, %s23, 1
        %p226 = scmp.lt.s32.totalorder %s24, 0
        %s227 = scalar_select %p226, %s24, 0
        %s228 = smul.addr %s225, 8
        %s229 = sadd.s32 %s227, %s228
        %s230 = smul.addr %s229, 4
        %s231 = scalar_lea.vmem %s0, %s230
        %p232 = pneg %p54
        %p233 = pneg %p51
        %p234 = pneg %p75
        %p235 = pneg %p72
        %p236 = pneg %p96
        %p237 = pneg %p93
        %p238 = pneg %p117
        %p239 = pneg %p114
        %p240 = scmp.lt.s32.totalorder %s23, 1
        %s241 = scalar_select %p240, %s23, 1
        %s242 = smul.addr %s241, 8
        %s243 = scalar_lea.vmem %s4, %s242
        %p244 = pneg %p143
        %p245 = pneg %p140
        %p246 = pneg %p171
        %p247 = pneg %p168
        %s248 = sand.u32 %s158, 1
        %s249 = scalar_lea.sflag [#allocation4], %s248
        %s250 = sand.u32 %s158, 1
        %s251 = smul.addr %s250, 16
        %s252 = scalar_lea.vmem [#allocation3], %s251
        %p253 = scmp.lt.s32.totalorder %s23, 1
        %s254 = scalar_select %p253, %s23, 1
        %p255 = scmp.lt.s32.totalorder %s24, 0
        %s256 = scalar_select %p255, %s24, 0
        %s257 = smul.addr %s254, 8
        %s258 = sadd.s32 %s256, %s257
        %s259 = smul.addr %s258, 4
        %s260 = scalar_lea.vmem %s0, %s259
        %p261 = scmp.lt.s32.totalorder %s23, 1
        %s262 = scalar_select %p261, %s23, 1
        %s263 = smul.addr %s262, 8
        %s264 = scalar_lea.vmem %s4, %s263
        %v266 = vld [vmem:[%s3] sm:$0xff]
        %v267 = vld [vmem:[%s3 + $0x8] sm:$0xff]
        %v268 = vld [vmem:[%s3 + $0x10] sm:$0xff]
        %v269 = vld [vmem:[%s3 + $0x18] sm:$0xff]
        %v270 = vld [vmem:[%s3 + $0x20] sm:$0xff]
        %v271 = vld [vmem:[%s3 + $0x28] sm:$0xff]
        %v272 = vld [vmem:[%s3 + $0x30] sm:$0xff]
        %v273 = vld [vmem:[%s3 + $0x38] sm:$0xff]
        %v274 = vld [vmem:[%s3 + $0x40] sm:$0xff]
        %v275 = vld [vmem:[%s3 + $0x48] sm:$0xff]
        %v276 = vld [vmem:[%s3 + $0x50] sm:$0xff]
        %v277 = vld [vmem:[%s3 + $0x58] sm:$0xff]
        %v278 = vld [vmem:[%s3 + $0x60] sm:$0xff]
        %v279 = vld [vmem:[%s3 + $0x68] sm:$0xff]
        %v280 = vld [vmem:[%s3 + $0x70] sm:$0xff]
        %v281 = vld [vmem:[%s3 + $0x78] sm:$0xff]
        %v282 = vld [vmem:[%s3 + $0x80] sm:$0xff]
        %v283 = vld [vmem:[%s3 + $0x88] sm:$0xff]
        %v284 = vld [vmem:[%s3 + $0x90] sm:$0xff]
        %v285 = vld [vmem:[%s3 + $0x98] sm:$0xf]
        %v286 = vld [vmem:[%s260] sm:$0xf]
        %v287 = vld [vmem:[%s260 + $0x4] sm:$0xf]
        %v288 = vunpack.c.l.bf16 %v286
        %v289 = vunpack.c.l.bf16 %v287
        %s290 = scalar_lea.vmem %s260, 8
        %v291 = vld [vmem:[%s290] sm:$0xf]
        %v292 = vld [vmem:[%s290 + $0x4] sm:$0xf]
        %v293 = vunpack.c.l.bf16 %v291
        %v294 = vunpack.c.l.bf16 %v292
        %s295 = scalar_lea.vmem %s260, 16
        %v296 = vld [vmem:[%s295] sm:$0xf]
        %v297 = vld [vmem:[%s295 + $0x4] sm:$0xf]
        %v298 = vunpack.c.l.bf16 %v296
        %v299 = vunpack.c.l.bf16 %v297
        %s300 = scalar_lea.vmem %s260, 24
        %v301 = vld [vmem:[%s300] sm:$0xf]
        %v302 = vld [vmem:[%s300 + $0x4] sm:$0xf]
        %v303 = vunpack.c.l.bf16 %v301
        %v304 = vunpack.c.l.bf16 %v302
        %vm305 = vcmask 523264
        %v307 = vsel %vm305, %v285, 0
        %309 = vmatpush.msra.mxu0 0.0
        %310 = vmatpush.msra.mxu0 0.0
        %311 = vmatpush.msra.mxu0 0.0
        %312 = vmatpush.msra.mxu0 0.0
        %313 = vmatpush.msra.mxu0 0.0
        %314 = vmatpush.msra.mxu0 0.0
        %315 = vmatpush.msra.mxu0 0.0
        %316 = vmatpush.msra.mxu0 0.0
        %317 = vmatpush.msra.mxu0 %v304
        %318 = vmatpush.msra.mxu0 %v303
        %319 = vmatpush.msra.mxu0 %v299
        %320 = vmatpush.msra.mxu0 %v298
        %321 = vmatpush.msra.mxu0 %v294
        %322 = vmatpush.msra.mxu0 %v293
        %323 = vmatpush.msra.mxu0 %v289
        %324 = vmatpush.msra.mxu0 %v288
        %325 = vmatmul.f32.gmra.mxu0 %v307
        %v326 = vpop.f32.mrf.mxu0
        %v327 = vadd.f32 0.0, %v326
        %328 = vdwg.mxu0
        %v329 = vmul.f32 %v288, %v288
        %v330 = vmul.f32 %v289, %v289
        %v331 = vmul.f32 %v293, %v293
        %v332 = vmul.f32 %v294, %v294
        %v333 = vmul.f32 %v298, %v298
        %v334 = vmul.f32 %v299, %v299
        %v335 = vmul.f32 %v303, %v303
        %v336 = vmul.f32 %v304, %v304
        %337 = vmatpush.msra.mxu0 0.0
        %338 = vmatpush.msra.mxu0 0.0
        %339 = vmatpush.msra.mxu0 0.0
        %340 = vmatpush.msra.mxu0 0.0
        %341 = vmatpush.msra.mxu0 0.0
        %342 = vmatpush.msra.mxu0 0.0
        %343 = vmatpush.msra.mxu0 0.0
        %344 = vmatpush.msra.mxu0 0.0
        %345 = vmatpush.msra.mxu0 %v336
        %346 = vmatpush.msra.mxu0 %v335
        %347 = vmatpush.msra.mxu0 %v334
        %348 = vmatpush.msra.mxu0 %v333
        %349 = vmatpush.msra.mxu0 %v332
        %350 = vmatpush.msra.mxu0 %v331
        %351 = vmatpush.msra.mxu0 %v330
        %352 = vmatpush.msra.mxu0 %v329
        %353 = vmatmul.f32.gmra.mxu0 %v307
        %v354 = vpop.f32.mrf.mxu0
        %v355 = vadd.f32 0.0, %v354
        %356 = vdwg.mxu0
        %v357 = vmul.f32 %v327, %v327
        %v358 = vsub.f32 %v355, %v357
        %v359 = vadd.f32 %v358, 1e-05
        %v360 = vrsqrt.pop %v359
        %v361 = vmul.f32 %v360, %v359
        %v362 = vmul.f32 %v361, %v360
        %v363 = vmul.f32 0.5, %v362
        %v364 = vsub.f32 1.5, %v363
        %v365 = vmul.f32 %v360, %v364
        %vm366 = vweird.f32 %v359
        %vm367 = vweird.f32 %v360
        %vm368 = vmor %vm366, %vm367
        %v369 = vsel %vm368, %v360, %v365
        %v370 = vperm.slane %v327, 0
        %v371 = vsub.f32 %v288, %v370
        %v372 = vsub.f32 %v289, %v370
        %v373 = vperm.slane %v369, 0
        %v374 = vmul.f32 %v371, %v373
        %v375 = vmul.f32 %v372, %v373
        %377 = vset.pattern.permute.xlu0 0
        %378 = vperm.xlu0 %377, %v266
        %v379 = vpop.permute.xlu0 %378
        %382 = vset.pattern.permute.xlu0 0
        %383 = vperm.xlu0 %382, %v267
        %v384 = vpop.permute.xlu0 %383
        %v386 = vmul.f32 %v374, %v379
        %v387 = vmul.f32 %v375, %v384
        %389 = vset.pattern.permute.xlu0 0
        %390 = vperm.xlu0 %389, %v268
        %v391 = vpop.permute.xlu0 %390
        %394 = vset.pattern.permute.xlu0 0
        %395 = vperm.xlu0 %394, %v269
        %v396 = vpop.permute.xlu0 %395
        %v398 = vadd.f32 %v386, %v391
        %v399 = vadd.f32 %v387, %v396
        %v400 = vperm.slane %v327, 1
        %v401 = vsub.f32 %v293, %v400
        %v402 = vsub.f32 %v294, %v400
        %v403 = vperm.slane %v369, 1
        %v404 = vmul.f32 %v401, %v403
        %v405 = vmul.f32 %v402, %v403
        %v406 = vmul.f32 %v404, %v379
        %v407 = vmul.f32 %v405, %v384
        %v408 = vadd.f32 %v406, %v391
        %v409 = vadd.f32 %v407, %v396
        %v410 = vperm.slane %v327, 2
        %v411 = vsub.f32 %v298, %v410
        %v412 = vsub.f32 %v299, %v410
        %v413 = vperm.slane %v369, 2
        %v414 = vmul.f32 %v411, %v413
        %v415 = vmul.f32 %v412, %v413
        %v416 = vmul.f32 %v414, %v379
        %v417 = vmul.f32 %v415, %v384
        %v418 = vadd.f32 %v416, %v391
        %v419 = vadd.f32 %v417, %v396
        %v420 = vperm.slane %v327, 3
        %v421 = vsub.f32 %v303, %v420
        %v422 = vsub.f32 %v304, %v420
        %v423 = vperm.slane %v369, 3
        %v424 = vmul.f32 %v421, %v423
        %v425 = vmul.f32 %v422, %v423
        %v426 = vmul.f32 %v424, %v379
        %v427 = vmul.f32 %v425, %v384
        %v428 = vadd.f32 %v426, %v391
        %v429 = vadd.f32 %v427, %v396
        %v430 = vpack.c.bf16 %v399, %v398
        %v431 = vpack.c.bf16 %v409, %v408
        %v432 = vpack.c.bf16 %v419, %v418
        %v433 = vpack.c.bf16 %v429, %v428
        %v434 = vld [vmem:[%s1] sm:$0xf]
        %v435 = vld [vmem:[%s1 + $0x4] sm:$0xf]
        %v436 = vld [vmem:[%s1 + $0x8] sm:$0xf]
        %v437 = vld [vmem:[%s1 + $0xc] sm:$0xf]
        %v438 = vld [vmem:[%s1 + $0x10] sm:$0xf]
        %v439 = vld [vmem:[%s1 + $0x14] sm:$0xf]
        %v440 = vld [vmem:[%s1 + $0x18] sm:$0xf]
        %v441 = vld [vmem:[%s1 + $0x1c] sm:$0xf]
        %v442 = vld [vmem:[%s1 + $0x20] sm:$0xf]
        %v443 = vld [vmem:[%s1 + $0x24] sm:$0xf]
        %v444 = vld [vmem:[%s1 + $0x28] sm:$0xf]
        %v445 = vld [vmem:[%s1 + $0x2c] sm:$0xf]
        %v446 = vld [vmem:[%s1 + $0x30] sm:$0xf]
        %v447 = vld [vmem:[%s1 + $0x34] sm:$0xf]
        %v448 = vld [vmem:[%s1 + $0x38] sm:$0xf]
        %v449 = vld [vmem:[%s1 + $0x3c] sm:$0xf]
        %v450 = vld [vmem:[%s1 + $0x40] sm:$0xf]
        %v451 = vld [vmem:[%s1 + $0x44] sm:$0xf]
        %v470 = vunpack.c.l.b16 %v434
        %v471 = vunpack.c.l.b16 %v435
        %v472 = vunpack.c.l.b16 %v436
        %v473 = vunpack.c.l.b16 %v437
        %v474 = vunpack.c.l.b16 %v438
        %v475 = vunpack.c.l.b16 %v439
        %v476 = vunpack.c.l.b16 %v440
        %v477 = vunpack.c.l.b16 %v441
        %v478 = vunpack.c.l.b16 %v442
        %v479 = vunpack.c.l.b16 %v443
        %v480 = vunpack.c.l.b16 %v444
        %v481 = vunpack.c.l.b16 %v445
        %v482 = vunpack.c.l.b16 %v446
        %v483 = vunpack.c.l.b16 %v447
        %v484 = vunpack.c.l.b16 %v448
        %v485 = vunpack.c.l.b16 %v449
        %v486 = vunpack.c.l.b16 %v450
        %v487 = vunpack.c.l.b16 %v451
        %v488 = vpack.c.b16 %v471, %v470
        %v489 = vpack.c.b16 %v473, %v472
        %v490 = vpack.c.b16 %v475, %v474
        %v491 = vpack.c.b16 %v477, %v476
        %v492 = vpack.c.b16 %v479, %v478
        %v493 = vpack.c.b16 %v481, %v480
        %v494 = vpack.c.b16 %v483, %v482
        %v495 = vpack.c.b16 %v485, %v484
        %v496 = vpack.c.b16 %v487, %v486
        %v498 = vsel %vm305, %v488, 0
        %v501 = vsel %vm305, %v489, 0
        %v504 = vsel %vm305, %v490, 0
        %v507 = vsel %vm305, %v491, 0
        %v510 = vsel %vm305, %v492, 0
        %v513 = vsel %vm305, %v493, 0
        %v516 = vsel %vm305, %v494, 0
        %v519 = vsel %vm305, %v495, 0
        %v522 = vsel %vm305, %v496, 0
        %524 = vmatpush.bf16.msra.mxu0 0
        %525 = vmatpush.bf16.msra.mxu0 0
        %526 = vmatpush.bf16.msra.mxu0 0
        %527 = vmatpush.bf16.msra.mxu0 0
        %528 = vmatpush.bf16.msra.mxu0 %v433
        %529 = vmatpush.bf16.msra.mxu0 %v432
        %530 = vmatpush.bf16.msra.mxu0 %v431
        %531 = vmatpush.bf16.msra.mxu0 %v430
        %532 = vmatmul.bf16.gmra.mxu0 %v498
        %v533 = vpop.f32.mrf.mxu0
        %v534 = vadd.f32 0.0, %v533
        %v535 = vpop.f32.mrf.mxu0
        %v536 = vadd.f32 0.0, %v535
        %537 = vmatmul.bf16.gmra.mxu0 %v501
        %v538 = vpop.f32.mrf.mxu0
        %v539 = vadd.f32 0.0, %v538
        %v540 = vpop.f32.mrf.mxu0
        %v541 = vadd.f32 0.0, %v540
        %542 = vmatmul.bf16.gmra.mxu0 %v504
        %v543 = vpop.f32.mrf.mxu0
        %v544 = vadd.f32 0.0, %v543
        %v545 = vpop.f32.mrf.mxu0
        %v546 = vadd.f32 0.0, %v545
        %547 = vmatmul.bf16.gmra.mxu0 %v507
        %v548 = vpop.f32.mrf.mxu0
        %v549 = vadd.f32 0.0, %v548
        %v550 = vpop.f32.mrf.mxu0
        %v551 = vadd.f32 0.0, %v550
        %552 = vmatmul.bf16.gmra.mxu0 %v510
        %v553 = vpop.f32.mrf.mxu0
        %v554 = vadd.f32 0.0, %v553
        %v555 = vpop.f32.mrf.mxu0
        %v556 = vadd.f32 0.0, %v555
        %557 = vmatmul.bf16.gmra.mxu0 %v513
        %v558 = vpop.f32.mrf.mxu0
        %v559 = vadd.f32 0.0, %v558
        %v560 = vpop.f32.mrf.mxu0
        %v561 = vadd.f32 0.0, %v560
        %562 = vmatmul.bf16.gmra.mxu0 %v516
        %v563 = vpop.f32.mrf.mxu0
        %v564 = vadd.f32 0.0, %v563
        %v565 = vpop.f32.mrf.mxu0
        %v566 = vadd.f32 0.0, %v565
        %567 = vmatmul.bf16.gmra.mxu0 %v519
        %v568 = vpop.f32.mrf.mxu0
        %v569 = vadd.f32 0.0, %v568
        %v570 = vpop.f32.mrf.mxu0
        %v571 = vadd.f32 0.0, %v570
        %572 = vmatmul.bf16.gmra.mxu0 %v522
        %v573 = vpop.f32.mrf.mxu0
        %v574 = vadd.f32 0.0, %v573
        %v575 = vpop.f32.mrf.mxu0
        %v576 = vadd.f32 0.0, %v575
        %577 = vdwg.mxu0
        %578 = vst.msk [vmem:[#allocation2] sm:$0xff] %vm305, %v534
        %579 = vst.msk [vmem:[#allocation2 + $0x8] sm:$0xff] %vm305, %v536
        %580 = vst.msk [vmem:[#allocation2 + $0x10] sm:$0xff] %vm305, %v539
        %581 = vst.msk [vmem:[#allocation2 + $0x18] sm:$0xff] %vm305, %v541
        %582 = vst.msk [vmem:[#allocation2 + $0x20] sm:$0xff] %vm305, %v544
        %583 = vst.msk [vmem:[#allocation2 + $0x28] sm:$0xff] %vm305, %v546
        %584 = vst.msk [vmem:[#allocation2 + $0x30] sm:$0xff] %vm305, %v549
        %585 = vst.msk [vmem:[#allocation2 + $0x38] sm:$0xff] %vm305, %v551
        %586 = vst.msk [vmem:[#allocation2 + $0x40] sm:$0xff] %vm305, %v554
        %587 = vst.msk [vmem:[#allocation2 + $0x48] sm:$0xff] %vm305, %v556
        %588 = vst.msk [vmem:[#allocation2 + $0x50] sm:$0xff] %vm305, %v559
        %589 = vst.msk [vmem:[#allocation2 + $0x58] sm:$0xff] %vm305, %v561
        %590 = vst.msk [vmem:[#allocation2 + $0x60] sm:$0xff] %vm305, %v564
        %591 = vst.msk [vmem:[#allocation2 + $0x68] sm:$0xff] %vm305, %v566
        %592 = vst.msk [vmem:[#allocation2 + $0x70] sm:$0xff] %vm305, %v569
        %593 = vst.msk [vmem:[#allocation2 + $0x78] sm:$0xff] %vm305, %v571
        %594 = vst.msk [vmem:[#allocation2 + $0x80] sm:$0xff] %vm305, %v574
        %595 = vst.msk [vmem:[#allocation2 + $0x88] sm:$0xff] %vm305, %v576
        %v596 = vld [vmem:[#allocation2] sm:$0xff]
        %v597 = vld [vmem:[#allocation2 + $0x8] sm:$0xff]
        %v598 = vld [vmem:[#allocation2 + $0x10] sm:$0xff]
        %v599 = vld [vmem:[#allocation2 + $0x18] sm:$0xff]
        %v600 = vmul.f32 %v596, %v598
        %v601 = vmul.f32 %v597, %v599
        %v602 = vld [vmem:[#allocation2 + $0x20] sm:$0xff]
        %v603 = vld [vmem:[#allocation2 + $0x28] sm:$0xff]
        %v604 = vmul.f32 %v596, %v602
        %v605 = vmul.f32 %v597, %v603
        %v606 = vld [vmem:[#allocation2 + $0x30] sm:$0xff]
        %v607 = vld [vmem:[#allocation2 + $0x38] sm:$0xff]
        %v608 = vmul.f32 %v596, %v606
        %v609 = vmul.f32 %v597, %v607
        %v610 = vld [vmem:[#allocation2 + $0x40] sm:$0xff]
        %v611 = vld [vmem:[#allocation2 + $0x48] sm:$0xff]
        %v612 = vmul.f32 %v596, %v610
        %v613 = vmul.f32 %v597, %v611
        %v614 = vld [vmem:[%s264] sm:$0xff]
        %616 = vset.pattern.permute.xlu0 0
        %617 = vperm.xlu0 %616, %v614
        %v618 = vpop.permute.xlu0 %617
        %v621 = vsel %vm305, %v284, 0
        %623 = vmatpush.msra.mxu0 0.0
        %624 = vmatpush.msra.mxu0 0.0
        %625 = vmatpush.msra.mxu0 0.0
        %626 = vmatpush.msra.mxu0 0.0
        %627 = vmatpush.msra.mxu0 0.0
        %628 = vmatpush.msra.mxu0 0.0
        %629 = vmatpush.msra.mxu0 0.0
        %630 = vmatpush.msra.mxu0 0.0
        %631 = vmatpush.msra.mxu0 %v613
        %632 = vmatpush.msra.mxu0 %v612
        %633 = vmatpush.msra.mxu0 %v609
        %634 = vmatpush.msra.mxu0 %v608
        %635 = vmatpush.msra.mxu0 %v605
        %636 = vmatpush.msra.mxu0 %v604
        %637 = vmatpush.msra.mxu0 %v601
        %638 = vmatpush.msra.mxu0 %v600
        %639 = vmatmul.f32.gmra.mxu0 %v621
        %v640 = vpop.f32.mrf.mxu0
        %v641 = vadd.f32 %v618, %v640
        %642 = vdwg.mxu0
        %vm643 = vcmask 519168
        %v644 = vsel %vm643, %v641, -inf
        %v645 = vrot.slane %v644, 4
        %v646 = vmax.f32 %v644, %v645
        %v647 = vrot.slane %v646, 2
        %v648 = vmax.f32 %v646, %v647
        %v649 = vrot.slane %v648, 1
        %v650 = vmax.f32 %v648, %v649
        %v651 = vsub.f32 %v641, %v650
        %v652 = vmul.f32 %v651, 1.442695
        %v653 = vpow.pop %v652
        %vm654 = vcmask 523268
        %v655 = vsel %vm654, %v641, -inf
        %v656 = vrot.slane %v655, 4
        %v657 = vmax.f32 %v655, %v656
        %v658 = vrot.slane %v657, 2
        %v659 = vmax.f32 %v657, %v658
        %v660 = vrot.slane %v659, 1
        %v661 = vmax.f32 %v659, %v660
        %v662 = vsub.f32 %v641, %v661
        %v663 = vmul.f32 %v662, 1.442695
        %v664 = vpow.pop %v663
        %v665 = vsel %vm643, %v653, 0.0
        %v666 = vrot.slane %v665, 4
        %v667 = vadd.f32 %v665, %v666
        %v668 = vrot.slane %v667, 2
        %v669 = vadd.f32 %v667, %v668
        %v670 = vrot.slane %v669, 1
        %v671 = vadd.f32 %v669, %v670
        %v672 = vrcp.pop %v671
        %v674 = vrot.slane %v664, 4
        %v676 = vsel %vm643, %v674, 0.0
        %v677 = vrot.slane %v676, 4
        %v678 = vadd.f32 %v676, %v677
        %v679 = vrot.slane %v678, 2
        %v680 = vadd.f32 %v678, %v679
        %v681 = vrot.slane %v680, 1
        %v682 = vadd.f32 %v680, %v681
        %v683 = vrcp.pop %v682
        %v684 = vld [vmem:[#allocation2 + $0x50] sm:$0xff]
        %v685 = vperm.slane %v653, 0
        %v686 = vmul.f32 %v685, %v684
        %v687 = vld [vmem:[#allocation2 + $0x58] sm:$0xff]
        %v688 = vperm.slane %v664, 4
        %v689 = vmul.f32 %v688, %v687
        %v690 = vld [vmem:[#allocation2 + $0x60] sm:$0xff]
        %v691 = vperm.slane %v653, 1
        %v692 = vmul.f32 %v691, %v690
        %v693 = vadd.f32 %v686, %v692
        %v694 = vld [vmem:[#allocation2 + $0x68] sm:$0xff]
        %v695 = vperm.slane %v664, 5
        %v696 = vmul.f32 %v695, %v694
        %v697 = vadd.f32 %v689, %v696
        %v698 = vld [vmem:[#allocation2 + $0x70] sm:$0xff]
        %v699 = vperm.slane %v653, 2
        %v700 = vmul.f32 %v699, %v698
        %v701 = vadd.f32 %v693, %v700
        %v702 = vld [vmem:[#allocation2 + $0x78] sm:$0xff]
        %v703 = vperm.slane %v664, 6
        %v704 = vmul.f32 %v703, %v702
        %v705 = vadd.f32 %v697, %v704
        %v706 = vld [vmem:[#allocation2 + $0x80] sm:$0xff]
        %v707 = vperm.slane %v653, 3
        %v708 = vmul.f32 %v707, %v706
        %v709 = vadd.f32 %v701, %v708
        %v710 = vld [vmem:[#allocation2 + $0x88] sm:$0xff]
        %v711 = vperm.slane %v664, 7
        %v712 = vmul.f32 %v711, %v710
        %v713 = vadd.f32 %v705, %v712
        %v714 = vmul.f32 %v709, %v672
        %v715 = vmul.f32 %v713, %v683
        %v716 = vpack.c.bf16 %v715, %v714
        %v717 = vld [vmem:[%s2] sm:$0xf]
        %v718 = vld [vmem:[%s2 + $0x4] sm:$0xf]
        %v719 = vld [vmem:[%s260] sm:$0xf]
        %v720 = vld [vmem:[%s260 + $0x4] sm:$0xf]
        %v721 = vunpack.c.l.bf16 %v719
        %v722 = vunpack.c.l.bf16 %v720
        %v725 = vunpack.c.l.b16 %v717
        %v726 = vunpack.c.l.b16 %v718
        %v727 = vpack.c.b16 %v726, %v725
        %vm728 = vcmask 130048
        %v730 = vsel %vm728, %v727, 0
        %732 = vmatpush.bf16.msra.mxu0 0
        %733 = vmatpush.bf16.msra.mxu0 0
        %734 = vmatpush.bf16.msra.mxu0 0
        %735 = vmatpush.bf16.msra.mxu0 0
        %736 = vmatpush.bf16.msra.mxu0 0
        %737 = vmatpush.bf16.msra.mxu0 0
        %738 = vmatpush.bf16.msra.mxu0 0
        %739 = vmatpush.bf16.msra.mxu0 %v716
        %740 = vmatmul.bf16.gmra.mxu0 %v730
        %v741 = vpop.f32.mrf.mxu0
        %v742 = vadd.f32 0.0, %v741
        %v743 = vpop.f32.mrf.mxu0
        %v744 = vadd.f32 0.0, %v743
        %745 = vdwg.mxu0
        %v746 = vadd.f32 %v721, %v742
        %v747 = vadd.f32 %v722, %v744
        %v748 = vsel %vm305, %v746, 0.0
        %v749 = vsel %vm305, %v747, 0.0
        %v750 = vadd.f32 %v748, %v749
        %v751 = vrot.slane %v750, 4
        %v752 = vadd.f32 %v750, %v751
        %v753 = vrot.slane %v752, 2
        %v754 = vadd.f32 %v752, %v753
        %v755 = vrot.slane %v754, 1
        %v756 = vadd.f32 %v754, %v755
        %v757 = vrcp.pop 16.0
        %v758 = vmul.f32 16.0, %v757
        %v759 = vsub.f32 1.0, %v758
        %v760 = vmul.f32 %v757, %v759
        %v761 = vadd.f32 %v757, %v760
        %vm762 = vweird.f32 %v757
        %v763 = vsel %vm762, %v757, %v761
        %v764 = vmul.f32 %v756, %v763
        %v765 = vmul.f32 %v746, %v746
        %v766 = vmul.f32 %v747, %v747
        %v767 = vsel %vm305, %v765, 0.0
        %v768 = vsel %vm305, %v766, 0.0
        %v769 = vadd.f32 %v767, %v768
        %v770 = vrot.slane %v769, 4
        %v771 = vadd.f32 %v769, %v770
        %v772 = vrot.slane %v771, 2
        %v773 = vadd.f32 %v771, %v772
        %v774 = vrot.slane %v773, 1
        %v775 = vadd.f32 %v773, %v774
        %v776 = vmul.f32 %v775, %v763
        %v777 = vmul.f32 %v764, %v764
        %v778 = vsub.f32 %v776, %v777
        %v779 = vadd.f32 %v778, 1e-05
        %v780 = vrsqrt.pop %v779
        %v781 = vmul.f32 %v780, %v779
        %v782 = vmul.f32 %v781, %v780
        %v783 = vmul.f32 0.5, %v782
        %v784 = vsub.f32 1.5, %v783
        %v785 = vmul.f32 %v780, %v784
        %vm786 = vweird.f32 %v779
        %vm787 = vweird.f32 %v780
        %vm788 = vmor %vm786, %vm787
        %v789 = vsel %vm788, %v780, %v785
        %v790 = vsub.f32 %v746, %v764
        %v791 = vsub.f32 %v747, %v764
        %v792 = vmul.f32 %v790, %v789
        %v793 = vmul.f32 %v791, %v789
        %795 = vset.pattern.permute.xlu0 0
        %796 = vperm.xlu0 %795, %v270
        %v797 = vpop.permute.xlu0 %796
        %800 = vset.pattern.permute.xlu0 0
        %801 = vperm.xlu0 %800, %v271
        %v802 = vpop.permute.xlu0 %801
        %v804 = vmul.f32 %v792, %v797
        %v805 = vmul.f32 %v793, %v802
        %807 = vset.pattern.permute.xlu0 0
        %808 = vperm.xlu0 %807, %v272
        %v809 = vpop.permute.xlu0 %808
        %812 = vset.pattern.permute.xlu0 0
        %813 = vperm.xlu0 %812, %v273
        %v814 = vpop.permute.xlu0 %813
        %v816 = vadd.f32 %v804, %v809
        %v817 = vadd.f32 %v805, %v814
        %v818 = vpack.c.bf16 %v817, %v816
        %v819 = vld [vmem:[%s2 + $0x8] sm:$0xf]
        %v820 = vld [vmem:[%s2 + $0xc] sm:$0xf]
        %v821 = vld [vmem:[%s2 + $0x10] sm:$0xf]
        %v822 = vld [vmem:[%s2 + $0x14] sm:$0xf]
        %824 = vset.pattern.permute.xlu0 0
        %825 = vperm.xlu0 %824, %v278
        %v826 = vpop.permute.xlu0 %825
        %829 = vset.pattern.permute.xlu0 0
        %830 = vperm.xlu0 %829, %v279
        %v831 = vpop.permute.xlu0 %830
        %834 = vset.pattern.permute.xlu0 0
        %835 = vperm.xlu0 %834, %v280
        %v836 = vpop.permute.xlu0 %835
        %839 = vset.pattern.permute.xlu0 0
        %840 = vperm.xlu0 %839, %v281
        %v841 = vpop.permute.xlu0 %840
        %v847 = vunpack.c.l.b16 %v819
        %v848 = vunpack.c.l.b16 %v820
        %v849 = vunpack.c.l.b16 %v821
        %v850 = vunpack.c.l.b16 %v822
        %v851 = vpack.c.b16 %v848, %v847
        %v852 = vpack.c.b16 %v850, %v849
        %v854 = vsel %vm728, %v851, 0
        %v857 = vsel %vm728, %v852, 0
        %859 = vmatpush.bf16.msra.mxu0 0
        %860 = vmatpush.bf16.msra.mxu0 0
        %861 = vmatpush.bf16.msra.mxu0 0
        %862 = vmatpush.bf16.msra.mxu0 0
        %863 = vmatpush.bf16.msra.mxu0 0
        %864 = vmatpush.bf16.msra.mxu0 0
        %865 = vmatpush.bf16.msra.mxu0 0
        %866 = vmatpush.bf16.msra.mxu0 %v818
        %867 = vmatmul.bf16.gmra.mxu0 %v854
        %v868 = vpop.f32.mrf.mxu0
        %v869 = vadd.f32 %v826, %v868
        %v870 = vpop.f32.mrf.mxu0
        %v871 = vadd.f32 %v831, %v870
        %872 = vmatmul.bf16.gmra.mxu0 %v857
        %v873 = vpop.f32.mrf.mxu0
        %v874 = vadd.f32 %v836, %v873
        %v875 = vpop.f32.mrf.mxu0
        %v876 = vadd.f32 %v841, %v875
        %877 = vdwg.mxu0
        %v878 = vmul.f32 %v869, %v869
        %v879 = vmul.f32 %v871, %v871
        %v880 = vmul.f32 %v874, %v874
        %v881 = vmul.f32 %v876, %v876
        %v882 = vmul.f32 %v869, %v878
        %v883 = vmul.f32 %v871, %v879
        %v884 = vmul.f32 %v874, %v880
        %v885 = vmul.f32 %v876, %v881
        %v886 = vmul.f32 %v882, 0.044715
        %v887 = vmul.f32 %v883, 0.044715
        %v888 = vmul.f32 %v884, 0.044715
        %v889 = vmul.f32 %v885, 0.044715
        %v890 = vadd.f32 %v869, %v886
        %v891 = vadd.f32 %v871, %v887
        %v892 = vadd.f32 %v874, %v888
        %v893 = vadd.f32 %v876, %v889
        %v894 = vmul.f32 %v890, 0.7978846
        %v895 = vmul.f32 %v891, 0.7978846
        %v896 = vmul.f32 %v892, 0.7978846
        %v897 = vmul.f32 %v893, 0.7978846
        %v898 = vtanh.pop %v894
        %v899 = vtanh.pop %v895
        %v900 = vtanh.pop %v896
        %v901 = vtanh.pop %v897
        %v902 = vadd.f32 %v898, 1.0
        %v903 = vadd.f32 %v899, 1.0
        %v904 = vadd.f32 %v900, 1.0
        %v905 = vadd.f32 %v901, 1.0
        %v906 = vmul.f32 %v902, 0.5
        %v907 = vmul.f32 %v903, 0.5
        %v908 = vmul.f32 %v904, 0.5
        %v909 = vmul.f32 %v905, 0.5
        %v910 = vmul.f32 %v869, %v906
        %v911 = vmul.f32 %v871, %v907
        %v912 = vmul.f32 %v874, %v908
        %v913 = vmul.f32 %v876, %v909
        %v914 = vpack.c.bf16 %v911, %v910
        %v915 = vpack.c.bf16 %v913, %v912
        %v916 = vld [vmem:[%s2 + $0x18] sm:$0xf]
        %v917 = vld [vmem:[%s2 + $0x1c] sm:$0xf]
        %v920 = vunpack.c.l.b16 %v916
        %v921 = vunpack.c.l.b16 %v917
        %v922 = vpack.c.b16 %v921, %v920
        %vm923 = vcmask 261120
        %v925 = vsel %vm923, %v922, 0
        %927 = vmatpush.bf16.msra.mxu0 0
        %928 = vmatpush.bf16.msra.mxu0 0
        %929 = vmatpush.bf16.msra.mxu0 0
        %930 = vmatpush.bf16.msra.mxu0 0
        %931 = vmatpush.bf16.msra.mxu0 0
        %932 = vmatpush.bf16.msra.mxu0 0
        %933 = vmatpush.bf16.msra.mxu0 %v915
        %934 = vmatpush.bf16.msra.mxu0 %v914
        %935 = vmatmul.bf16.gmra.mxu0 %v925
        %v936 = vpop.f32.mrf.mxu0
        %v937 = vadd.f32 0.0, %v936
        %v938 = vpop.f32.mrf.mxu0
        %v939 = vadd.f32 0.0, %v938
        %940 = vdwg.mxu0
        %v941 = vadd.f32 %v746, %v937
        %v942 = vadd.f32 %v747, %v939
        %944 = vset.pattern.permute.xlu0 0
        %945 = vperm.xlu0 %944, %v282
        %v946 = vpop.permute.xlu0 %945
        %949 = vset.pattern.permute.xlu0 0
        %950 = vperm.xlu0 %949, %v283
        %v951 = vpop.permute.xlu0 %950
        %v953 = vadd.f32 %v941, %v946
        %v954 = vadd.f32 %v942, %v951
        %v955 = vsel %vm305, %v953, 0.0
        %v956 = vsel %vm305, %v954, 0.0
        %v957 = vadd.f32 %v955, %v956
        %v958 = vrot.slane %v957, 4
        %v959 = vadd.f32 %v957, %v958
        %v960 = vrot.slane %v959, 2
        %v961 = vadd.f32 %v959, %v960
        %v962 = vrot.slane %v961, 1
        %v963 = vadd.f32 %v961, %v962
        %v964 = vmul.f32 %v963, %v763
        %v965 = vmul.f32 %v953, %v953
        %v966 = vmul.f32 %v954, %v954
        %v967 = vsel %vm305, %v965, 0.0
        %v968 = vsel %vm305, %v966, 0.0
        %v969 = vadd.f32 %v967, %v968
        %v970 = vrot.slane %v969, 4
        %v971 = vadd.f32 %v969, %v970
        %v972 = vrot.slane %v971, 2
        %v973 = vadd.f32 %v971, %v972
        %v974 = vrot.slane %v973, 1
        %v975 = vadd.f32 %v973, %v974
        %v976 = vmul.f32 %v975, %v763
        %v977 = vmul.f32 %v964, %v964
        %v978 = vsub.f32 %v976, %v977
        %v979 = vadd.f32 %v978, 1e-05
        %v980 = vrsqrt.pop %v979
        %v981 = vmul.f32 %v980, %v979
        %v982 = vmul.f32 %v981, %v980
        %v983 = vmul.f32 0.5, %v982
        %v984 = vsub.f32 1.5, %v983
        %v985 = vmul.f32 %v980, %v984
        %vm986 = vweird.f32 %v979
        %vm987 = vweird.f32 %v980
        %vm988 = vmor %vm986, %vm987
        %v989 = vsel %vm988, %v980, %v985
        %v990 = vsub.f32 %v953, %v964
        %v991 = vsub.f32 %v954, %v964
        %v992 = vmul.f32 %v990, %v989
        %v993 = vmul.f32 %v991, %v989
        %995 = vset.pattern.permute.xlu0 0
        %996 = vperm.xlu0 %995, %v274
        %v997 = vpop.permute.xlu0 %996
        %1000 = vset.pattern.permute.xlu0 0
        %1001 = vperm.xlu0 %1000, %v275
        %v1002 = vpop.permute.xlu0 %1001
        %v1004 = vmul.f32 %v992, %v997
        %v1005 = vmul.f32 %v993, %v1002
        %1007 = vset.pattern.permute.xlu0 0
        %1008 = vperm.xlu0 %1007, %v276
        %v1009 = vpop.permute.xlu0 %1008
        %1012 = vset.pattern.permute.xlu0 0
        %1013 = vperm.xlu0 %1012, %v277
        %v1014 = vpop.permute.xlu0 %1013
        %v1016 = vadd.f32 %v1004, %v1009
        %v1017 = vadd.f32 %v1005, %v1014
        %1018 = vst.msk [vmem:[%s252] sm:$0xff] %vm305, %v1016
        %1019 = vst.msk [vmem:[%s252 + $0x8] sm:$0xff] %vm305, %v1017
        %s1020 = sand.u32 %s158, 1
        %s1021 = scalar_lea.sflag [#allocation4], %s1020
        %s1022 = sand.u32 %s158, 1
        %s1023 = smul.addr %s1022, 16
        %s1024 = scalar_lea.vmem [#allocation3], %s1023
        // Predicated region
        $region41: #{tpu_custom_call.1} parent=39 // pred_check
          %p1025 = pneg %p168
        $region42: #{tpu_custom_call.1} parent=39 // pred_check_branch
          %1027 = sbr.rel (%p1025) target = $region44
        $region43: #{tpu_custom_call.1} parent=39 // pred_region
          %1029 = vsyncadd %s1021, 0
          %s1030 = smul.addr %s23, 2
          %s1031 = sadd.s32 %s24, %s1030
          %s1032 = smul.addr %s1031, 8
          %s1033 = scalar_lea.hbm %s5, %s1032
          %s1034 = sshll.u32 %s1024, 4
          %s1035 = int_to_ptr.vmem [resolvable:$true] %s1034
          %s1036 = sshll.u32 %s1033, 4
          %s1037 = int_to_ptr.hbm [resolvable:$true] %s1036
          %1042 = dma.vmem_to_hbm [thread:$0]  %s1035, 256, %s1037, %s1021, 128, 128, 8
        $region44: #{tpu_custom_call.1} parent=39 // pred_fallthru
          _
      $region40: #{tpu_custom_call.1} parent=5 // pred_fallthru
        _
      %p1043 = scmp.le.s32.totalorder 2, %s14
      // Predicated region
      $region45: #{tpu_custom_call.1} parent=5 // pred_check
        %p1044 = pneg %p1043
      $region46: #{tpu_custom_call.1} parent=5 // pred_check_branch
        %1046 = sbr.rel (%p1044) target = $region48
      $region47: #{tpu_custom_call.1} parent=5 // pred_region
        %s1047 = ssub.s32 %s14, 2
        // Predicated region
        $region49: #{tpu_custom_call.1} parent=47 // pred_check
          %p1048 = pneg %p174
        $region50: #{tpu_custom_call.1} parent=47 // pred_check_branch
          %1050 = sbr.rel (%p1048) target = $region52
        $region51: #{tpu_custom_call.1} parent=47 // pred_region
          %s1051 = sand.u32 %s159, 1
          %s1052 = scalar_lea.sflag [#allocation4], %s1051
          %s1053 = sand.u32 %s159, 1
          %s1054 = smul.addr %s1053, 16
          %s1055 = scalar_lea.vmem [#allocation3], %s1054
          %1057 = dma.done %s1052, 256
        $region52: #{tpu_custom_call.1} parent=47 // pred_fallthru
          _
      $region48: #{tpu_custom_call.1} parent=5 // pred_fallthru
        _
    $region6: #{tpu_custom_call.1} parent=1 // loop_footer
      %s18 = sadd.s32 1, %s14
    $region7: #{tpu_custom_call.1} parent=1 // loop_footer_branch
      %13 = sbr.rel target = $region3
    $region8: #{tpu_custom_call.1} parent=1 // loop_exit
      _
    %1058 = vsyncpa [#allocation4], 1
    %s1059 = scalar_lea.sflag [#allocation4], 1
    %1060 = vsyncpa %s1059, 1

</llo_original>
